<compile_context>
chip_gen: v7x
topology: tpu7x:2x2x1
jax: 0.10.0
libtpu: 0.0.40
codegen_flags: <defaults>
</compile_context>

<pallas_src>
import functools

import jax
import jax.numpy as jnp
from jax import lax
from jax.experimental import pallas as pl
from jax.experimental.pallas import tpu as pltpu


def _round_up(a, b):
    return (a + b - 1) // b * b


def _device_kind():
    try:
        return jax.devices()[0].device_kind.lower()
    except Exception:
        return ""


def _num_tensorcores():
    # v7x has 2 TensorCores per chip; v5e/v6e have 1.  Best-effort, defaults to 1.
    return 2 if "v7" in _device_kind() else 1


def _gate_nl_dtype():
    # bf16 EUP/VPU exist on v6e/v7x (halves transcendental time on the serial path);
    # v5e (and unknown chips) keep f32 gate math.
    k = _device_kind()
    return jnp.bfloat16 if ("v6" in k or "v7" in k) else jnp.float32


# --------------------------------------------------------------------------- kernel
def _lstm_kernel(x_ref, w_ih_ref, b_ref, w_hh_ref, w_lin_ref, b_lin_ref,
                 out_ref, h_ref, c_ref, *, t_chunk, nl_dtype):
    """Runs `t_chunk` LSTM timesteps per grid step; h/c carried in VMEM scratch."""
    tci = pl.program_id(1)
    hp = h_ref.shape[1]

    @pl.when(tci == 0)
    def _init():
        h_ref[...] = jnp.zeros_like(h_ref)
        c_ref[...] = jnp.zeros_like(c_ref)

    w_ih = w_ih_ref[...]          # (I, 4Hp)  bf16, VMEM-resident
    w_hh = w_hh_ref[...]          # (Hp, 4Hp) bf16, VMEM-resident
    b = b_ref[...]                # (1, 4Hp)  f32  (b_ih + b_hh)

    def _sigmoid(v):              # tanh identity: one EUP push instead of exp + recip
        return 0.5 * (jnp.tanh(0.5 * v) + 1.0)

    def step(t, carry):
        h, c = carry              # h: bf16, c: f32
        # Input + recurrent projection, f32 MXU accumulation.  The x matmul does not
        # depend on h, so the unrolled scheduler can lift it off the h->h critical path.
        z = jnp.dot(x_ref[t], w_ih, preferred_element_type=jnp.float32) + b
        z = z + jnp.dot(h, w_hh, preferred_element_type=jnp.float32)
        # 128-lane-aligned gate slices (hp % 128 == 0).  Nonlinearities in nl_dtype
        # (bf16 on v6e/v7x, f32 on v5e); cell/hidden update math stays f32.
        i_g = _sigmoid(z[:, 0 * hp:1 * hp].astype(nl_dtype)).astype(jnp.float32)
        f_g = _sigmoid(z[:, 1 * hp:2 * hp].astype(nl_dtype)).astype(jnp.float32)
        g_g = jnp.tanh(z[:, 2 * hp:3 * hp].astype(nl_dtype)).astype(jnp.float32)
        o_g = _sigmoid(z[:, 3 * hp:4 * hp].astype(nl_dtype)).astype(jnp.float32)
        c_new = f_g * c + i_g * g_g
        h_new = o_g * jnp.tanh(c_new.astype(nl_dtype)).astype(jnp.float32)
        return h_new.astype(jnp.bfloat16), c_new

    h, c = lax.fori_loop(0, t_chunk, step, (h_ref[...], c_ref[...]), unroll=True)
    h_ref[...] = h
    c_ref[...] = c

    @pl.when(tci == pl.num_programs(1) - 1)
    def _final():
        # Linear(hidden, 1): degenerate N=1 matmul -> VPU multiply + lane reduce.
        out_ref[...] = (jnp.sum(h.astype(jnp.float32) * w_lin_ref[...],
                                axis=-1, keepdims=True) + b_lin_ref[...])


# --------------------------------------------------------------------------- wrapper
@jax.jit
def lstm_forward(x, w_ih, w_hh, b_ih, b_hh, w_lin, b_lin):
    """x: (B, T, I) batch-first (PyTorch convention). Returns (B, 1) float32."""
    B, T, I = x.shape
    H = w_hh.shape[1]                    # w_hh: (4H, H)
    Hp = _round_up(H, 128)               # lane-aligned hidden -> free 128-aligned gates
    G = 4 * Hp

    # ---- time chunk: largest divisor of T <= 8 (amortizes per-grid-step overhead) ----
    Tt = 1
    for cand in (8, 7, 6, 5, 4, 3, 2):
        if T % cand == 0:
            Tt = cand
            break

    # ---- batch tiling: multiple of 8; cap 64 (vreg pressure); >=2 tiles on v7x -------
    num_tc = _num_tensorcores()
    Bp = _round_up(max(B, 8), 8)
    tb_cap = 64
    if num_tc > 1 and Bp >= 16:
        TB = min(tb_cap, _round_up(pl.cdiv(Bp, num_tc), 8))
    else:
        TB = min(tb_cap, Bp)
    Bp = _round_up(Bp, TB)

    # ---- weight repacking (one-time; zero-padded gate columns keep results exact) ----
    def pad_gate_cols(a):                # (rows, 4H) -> (rows, 4*Hp), gates 128-aligned
        r = a.shape[0]
        a = a.reshape(r, 4, H)
        a = jnp.pad(a, ((0, 0), (0, 0), (0, Hp - H)))
        return a.reshape(r, G)

    w_ih_p = pad_gate_cols(jnp.asarray(w_ih, jnp.float32).T).astype(jnp.bfloat16)   # (I, G)
    w_hh_p = jnp.pad(pad_gate_cols(jnp.asarray(w_hh, jnp.float32).T),
                     ((0, Hp - H), (0, 0))).astype(jnp.bfloat16)                    # (Hp, G)
    b_p = pad_gate_cols((jnp.asarray(b_ih, jnp.float32)
                         + jnp.asarray(b_hh, jnp.float32)).reshape(1, 4 * H))       # (1, G)
    w_lin_p = jnp.pad(jnp.asarray(w_lin, jnp.float32), ((0, 0), (0, Hp - H)))       # (1, Hp)
    b_lin_p = jnp.asarray(b_lin, jnp.float32).reshape(1, 1)                         # (1, 1)

    # ---- input: pad batch, go time-major so x_ref[t] is a cheap leading-axis view ----
    x_p = jnp.pad(x.astype(jnp.bfloat16), ((0, Bp - B), (0, 0), (0, 0)))            # (Bp,T,I)
    x_tm = jnp.transpose(x_p, (1, 0, 2))                                            # (T,Bp,I)

    # ---- explicit VMEM budget (resident weights may be double-buffered by Pallas) ----
    # TODO(synk): for very large hidden sizes (Hp >= 2048, W_hh >= 32 MiB bf16) tile
    # W_hh along the 4*Hp gate axis so the residency fits v7x's 64 MiB VMEM.
    resident = I * G * 2 + Hp * G * 2 + G * 4 + Hp * 4 + 4
    streamed = 2 * (Tt * TB * I * 2 + TB * 4)
    scratch = TB * Hp * 2 + TB * Hp * 4
    vmem_limit = int(min(max(2 * resident + streamed + scratch + (8 << 20), 32 << 20),
                         96 << 20))

    kernel = functools.partial(_lstm_kernel, t_chunk=Tt, nl_dtype=_gate_nl_dtype())
    out_p = pl.pallas_call(
        kernel,
        out_shape=jax.ShapeDtypeStruct((Bp, 1), jnp.float32),
        grid=(Bp // TB, T // Tt),
        in_specs=[
            pl.BlockSpec((Tt, TB, I), lambda b, t: (t, b, 0)),   # streamed x time-chunk
            pl.BlockSpec((I, G), lambda b, t: (0, 0)),           # W_ih  resident
            pl.BlockSpec((1, G), lambda b, t: (0, 0)),           # bias  resident
            pl.BlockSpec((Hp, G), lambda b, t: (0, 0)),          # W_hh  resident
            pl.BlockSpec((1, Hp), lambda b, t: (0, 0)),          # linear weight
            pl.BlockSpec((1, 1), lambda b, t: (0, 0)),           # linear bias
        ],
        out_specs=pl.BlockSpec((TB, 1), lambda b, t: (b, 0)),
        scratch_shapes=[pltpu.VMEM((TB, Hp), jnp.bfloat16),      # h state (matmul dtype)
                        pltpu.VMEM((TB, Hp), jnp.float32)],      # c state (f32 accum)
        compiler_params=pltpu.CompilerParams(
            dimension_semantics=("parallel", "arbitrary"),
            vmem_limit_bytes=vmem_limit),
    )(x_tm, w_ih_p, b_p, w_hh_p, w_lin_p, b_lin_p)

    return out_p[:B]


def lstm_reference(x, w_ih, w_hh, b_ih, b_hh, w_lin, b_lin):
    """Pure-JAX f32 reference matching nn.LSTM + nn.Linear semantics."""
    B, T, I = x.shape
    H = w_hh.shape[1]
    b = b_ih + b_hh

    def step(carry, x_t):
        h, c = carry
        z = x_t @ w_ih.T + h @ w_hh.T + b
        i_g = jax.nn.sigmoid(z[:, 0:H])
        f_g = jax.nn.sigmoid(z[:, H:2 * H])
        g_g = jnp.tanh(z[:, 2 * H:3 * H])
        o_g = jax.nn.sigmoid(z[:, 3 * H:4 * H])
        c_new = f_g * c + i_g * g_g
        h_new = o_g * jnp.tanh(c_new)
        return (h_new, c_new), None

    (h_last, _), _ = lax.scan(step,
                              (jnp.zeros((B, H)), jnp.zeros((B, H))),
                              jnp.transpose(x, (1, 0, 2)))
    return h_last @ w_lin.T + b_lin


if __name__ == "__main__":
    # Small shapes consistent with the module's forward: x is (batch, seq, input_size).
    B, T, INPUT, HIDDEN = 2, 8, 16, 32

    key = jax.random.PRNGKey(0)
    ks = jax.random.split(key, 7)
    k_init = 1.0 / jnp.sqrt(HIDDEN)   # PyTorch default uniform(-1/sqrt(H), 1/sqrt(H))

    x = jax.random.normal(ks[0], (B, T, INPUT), jnp.float32)
    w_ih = jax.random.uniform(ks[1], (4 * HIDDEN, INPUT), jnp.float32, -k_init, k_init)
    w_hh = jax.random.uniform(ks[2], (4 * HIDDEN, HIDDEN), jnp.float32, -k_init, k_init)
    b_ih = jax.random.uniform(ks[3], (4 * HIDDEN,), jnp.float32, -k_init, k_init)
    b_hh = jax.random.uniform(ks[4], (4 * HIDDEN,), jnp.float32, -k_init, k_init)
    w_lin = jax.random.uniform(ks[5], (1, HIDDEN), jnp.float32, -k_init, k_init)
    b_lin = jax.random.uniform(ks[6], (1,), jnp.float32, -k_init, k_init)

    out = jax.block_until_ready(lstm_forward(x, w_ih, w_hh, b_ih, b_hh, w_lin, b_lin))
    ref = lstm_reference(x, w_ih, w_hh, b_ih, b_hh, w_lin, b_lin)

    assert out.shape == (B, 1), out.shape
    # bf16 weights/inputs with f32 accumulation: allow bf16-level tolerance vs f32 ref.
    assert jnp.allclose(out, ref, atol=5e-2, rtol=5e-2), (out, ref)
    print("KERNEL_OK")
</pallas_src>

<mosaic_0001>
module attributes {stable_mosaic.version = 11 : i64} {
  func.func @_lstm_kernel(%arg0: i32, %arg1: i32, %arg2: memref<8x8x16xbf16, #tpu.memory_space<vmem>>, %arg3: memref<16x512xbf16, #tpu.memory_space<vmem>>, %arg4: memref<1x512xf32, #tpu.memory_space<vmem>>, %arg5: memref<128x512xbf16, #tpu.memory_space<vmem>>, %arg6: memref<1x128xf32, #tpu.memory_space<vmem>>, %arg7: memref<1x1xf32, #tpu.memory_space<vmem>>, %arg8: memref<8x1xf32, #tpu.memory_space<vmem>>, %arg9: memref<8x128xbf16, #tpu.memory_space<vmem>>, %arg10: memref<8x128xf32, #tpu.memory_space<vmem>>) attributes {dimension_semantics = [#tpu.dimension_semantics<parallel>, #tpu.dimension_semantics<arbitrary>], iteration_bounds = array<i64: 1, 1>, scalar_prefetch = 0 : i64, scratch_operands = 2 : i64, tpu.core_type = #tpu.core_type<tc>, window_params = [{transform_indices = @transform_0, window_bounds = array<i64: 8, 8, 16>}, {pipeline_mode = #tpu.pipeline_mode<synchronous>, transform_indices = @transform_1, window_bounds = array<i64: 16, 512>}, {pipeline_mode = #tpu.pipeline_mode<synchronous>, transform_indices = @transform_2, window_bounds = array<i64: 1, 512>}, {pipeline_mode = #tpu.pipeline_mode<synchronous>, transform_indices = @transform_3, window_bounds = array<i64: 128, 512>}, {pipeline_mode = #tpu.pipeline_mode<synchronous>, transform_indices = @transform_4, window_bounds = array<i64: 1, 128>}, {pipeline_mode = #tpu.pipeline_mode<synchronous>, transform_indices = @transform_5, window_bounds = array<i64: 1, 1>}, {transform_indices = @transform_6, window_bounds = array<i64: 8, 1>}]} {
    %c0_i32 = arith.constant 0 : i32
    %0 = arith.cmpi eq, %arg1, %c0_i32 : i32
    %1 = arith.extui %0 : i1 to i32
    %c0_i32_0 = arith.constant 0 : i32
    %2 = arith.cmpi ne, %1, %c0_i32_0 : i32
    scf.if %2 {
      %cst_120 = arith.constant 0.000000e+00 : bf16
      %333 = vector.broadcast %cst_120 : bf16 to vector<8x128xbf16>
      %c0_121 = arith.constant 0 : index
      %c0_122 = arith.constant 0 : index
      %334 = vector.load %arg9[%c0_121, %c0_122] : memref<8x128xbf16, #tpu.memory_space<vmem>>, vector<8x128xbf16>
      tpu.vector_store %arg9[%c0_121, %c0_122], %333 {strides = array<i32>} : memref<8x128xbf16, #tpu.memory_space<vmem>>, vector<8x128xbf16>,
      %cst_123 = arith.constant 0.000000e+00 : f32
      %335 = vector.broadcast %cst_123 : f32 to vector<8x128xf32>
      %c0_124 = arith.constant 0 : index
      %c0_125 = arith.constant 0 : index
      %336 = vector.load %arg10[%c0_124, %c0_125] : memref<8x128xf32, #tpu.memory_space<vmem>>, vector<8x128xf32>
      tpu.vector_store %arg10[%c0_124, %c0_125], %335 {strides = array<i32>} : memref<8x128xf32, #tpu.memory_space<vmem>>, vector<8x128xf32>,
    } else {
    }
    %c0 = arith.constant 0 : index
    %c0_1 = arith.constant 0 : index
    %3 = vector.load %arg3[%c0, %c0_1] : memref<16x512xbf16, #tpu.memory_space<vmem>>, vector<16x512xbf16>
    %c0_2 = arith.constant 0 : index
    %c0_3 = arith.constant 0 : index
    %4 = vector.load %arg5[%c0_2, %c0_3] : memref<128x512xbf16, #tpu.memory_space<vmem>>, vector<128x512xbf16>
    %c0_4 = arith.constant 0 : index
    %c0_5 = arith.constant 0 : index
    %5 = vector.load %arg4[%c0_4, %c0_5] : memref<1x512xf32, #tpu.memory_space<vmem>>, vector<1x512xf32>
    %c0_6 = arith.constant 0 : index
    %c0_7 = arith.constant 0 : index
    %6 = vector.load %arg9[%c0_6, %c0_7] : memref<8x128xbf16, #tpu.memory_space<vmem>>, vector<8x128xbf16>
    %c0_8 = arith.constant 0 : index
    %c0_9 = arith.constant 0 : index
    %7 = vector.load %arg10[%c0_8, %c0_9] : memref<8x128xf32, #tpu.memory_space<vmem>>, vector<8x128xf32>
    %c0_i32_10 = arith.constant 0 : i32
    %8 = arith.index_cast %c0_i32_10 : i32 to index
    %c0_11 = arith.constant 0 : index
    %c0_12 = arith.constant 0 : index
    %9 = vector.load %arg2[%8, %c0_11, %c0_12] : memref<8x8x16xbf16, #tpu.memory_space<vmem>>, vector<1x8x16xbf16>
    %10 = vector.shape_cast %9 : vector<1x8x16xbf16> to vector<8x16xbf16>
    %cst = arith.constant dense<0.000000e+00> : vector<8x512xf32>
    %11 = tpu.matmul %10, %3, %cst {dimension_numbers = #tpu.dot_dimension_numbers<[1], [0], [0], [1], [0, 0, 1, 1], [], []>} : vector<8x16xbf16>, vector<16x512xbf16>, vector<8x512xf32> -> vector<8x512xf32>
    %12 = vector.broadcast %5 : vector<1x512xf32> to vector<8x512xf32>
    %13 = arith.addf %11, %12 : vector<8x512xf32>
    %cst_13 = arith.constant dense<0.000000e+00> : vector<8x512xf32>
    %14 = tpu.matmul %6, %4, %cst_13 {dimension_numbers = #tpu.dot_dimension_numbers<[1], [0], [0], [1], [0, 0, 1, 1], [], []>} : vector<8x128xbf16>, vector<128x512xbf16>, vector<8x512xf32> -> vector<8x512xf32>
    %15 = arith.addf %13, %14 : vector<8x512xf32>
    %16 = vector.extract_strided_slice %15 {offsets = [0, 0], sizes = [8, 128], strides = [1, 1]} : vector<8x512xf32> to vector<8x128xf32>
    %cst_14 = arith.constant 5.000000e-01 : f32
    %17 = vector.broadcast %cst_14 : f32 to vector<8x128xf32>
    %18 = arith.mulf %17, %16 : vector<8x128xf32>
    %19 = math.tanh %18 : vector<8x128xf32>
    %cst_15 = arith.constant 1.000000e+00 : f32
    %20 = vector.broadcast %cst_15 : f32 to vector<8x128xf32>
    %21 = arith.addf %19, %20 : vector<8x128xf32>
    %cst_16 = arith.constant 5.000000e-01 : f32
    %22 = vector.broadcast %cst_16 : f32 to vector<8x128xf32>
    %23 = arith.mulf %22, %21 : vector<8x128xf32>
    %24 = vector.extract_strided_slice %15 {offsets = [0, 128], sizes = [8, 128], strides = [1, 1]} : vector<8x512xf32> to vector<8x128xf32>
    %cst_17 = arith.constant 5.000000e-01 : f32
    %25 = vector.broadcast %cst_17 : f32 to vector<8x128xf32>
    %26 = arith.mulf %25, %24 : vector<8x128xf32>
    %27 = math.tanh %26 : vector<8x128xf32>
    %cst_18 = arith.constant 1.000000e+00 : f32
    %28 = vector.broadcast %cst_18 : f32 to vector<8x128xf32>
    %29 = arith.addf %27, %28 : vector<8x128xf32>
    %cst_19 = arith.constant 5.000000e-01 : f32
    %30 = vector.broadcast %cst_19 : f32 to vector<8x128xf32>
    %31 = arith.mulf %30, %29 : vector<8x128xf32>
    %32 = vector.extract_strided_slice %15 {offsets = [0, 256], sizes = [8, 128], strides = [1, 1]} : vector<8x512xf32> to vector<8x128xf32>
    %33 = math.tanh %32 : vector<8x128xf32>
    %34 = vector.extract_strided_slice %15 {offsets = [0, 384], sizes = [8, 128], strides = [1, 1]} : vector<8x512xf32> to vector<8x128xf32>
    %cst_20 = arith.constant 5.000000e-01 : f32
    %35 = vector.broadcast %cst_20 : f32 to vector<8x128xf32>
    %36 = arith.mulf %35, %34 : vector<8x128xf32>
    %37 = math.tanh %36 : vector<8x128xf32>
    %cst_21 = arith.constant 1.000000e+00 : f32
    %38 = vector.broadcast %cst_21 : f32 to vector<8x128xf32>
    %39 = arith.addf %37, %38 : vector<8x128xf32>
    %cst_22 = arith.constant 5.000000e-01 : f32
    %40 = vector.broadcast %cst_22 : f32 to vector<8x128xf32>
    %41 = arith.mulf %40, %39 : vector<8x128xf32>
    %42 = arith.mulf %31, %7 : vector<8x128xf32>
    %43 = arith.mulf %23, %33 : vector<8x128xf32>
    %44 = arith.addf %42, %43 : vector<8x128xf32>
    %45 = math.tanh %44 : vector<8x128xf32>
    %46 = arith.mulf %41, %45 : vector<8x128xf32>
    %47 = arith.truncf %46 : vector<8x128xf32> to vector<8x128xbf16>
    %c1_i32 = arith.constant 1 : i32
    %48 = arith.index_cast %c1_i32 : i32 to index
    %c0_23 = arith.constant 0 : index
    %c0_24 = arith.constant 0 : index
    %49 = vector.load %arg2[%48, %c0_23, %c0_24] : memref<8x8x16xbf16, #tpu.memory_space<vmem>>, vector<1x8x16xbf16>
    %50 = vector.shape_cast %49 : vector<1x8x16xbf16> to vector<8x16xbf16>
    %cst_25 = arith.constant dense<0.000000e+00> : vector<8x512xf32>
    %51 = tpu.matmul %50, %3, %cst_25 {dimension_numbers = #tpu.dot_dimension_numbers<[1], [0], [0], [1], [0, 0, 1, 1], [], []>} : vector<8x16xbf16>, vector<16x512xbf16>, vector<8x512xf32> -> vector<8x512xf32>
    %52 = vector.broadcast %5 : vector<1x512xf32> to vector<8x512xf32>
    %53 = arith.addf %51, %52 : vector<8x512xf32>
    %cst_26 = arith.constant dense<0.000000e+00> : vector<8x512xf32>
    %54 = tpu.matmul %47, %4, %cst_26 {dimension_numbers = #tpu.dot_dimension_numbers<[1], [0], [0], [1], [0, 0, 1, 1], [], []>} : vector<8x128xbf16>, vector<128x512xbf16>, vector<8x512xf32> -> vector<8x512xf32>
    %55 = arith.addf %53, %54 : vector<8x512xf32>
    %56 = vector.extract_strided_slice %55 {offsets = [0, 0], sizes = [8, 128], strides = [1, 1]} : vector<8x512xf32> to vector<8x128xf32>
    %cst_27 = arith.constant 5.000000e-01 : f32
    %57 = vector.broadcast %cst_27 : f32 to vector<8x128xf32>
    %58 = arith.mulf %57, %56 : vector<8x128xf32>
    %59 = math.tanh %58 : vector<8x128xf32>
    %cst_28 = arith.constant 1.000000e+00 : f32
    %60 = vector.broadcast %cst_28 : f32 to vector<8x128xf32>
    %61 = arith.addf %59, %60 : vector<8x128xf32>
    %cst_29 = arith.constant 5.000000e-01 : f32
    %62 = vector.broadcast %cst_29 : f32 to vector<8x128xf32>
    %63 = arith.mulf %62, %61 : vector<8x128xf32>
    %64 = vector.extract_strided_slice %55 {offsets = [0, 128], sizes = [8, 128], strides = [1, 1]} : vector<8x512xf32> to vector<8x128xf32>
    %cst_30 = arith.constant 5.000000e-01 : f32
    %65 = vector.broadcast %cst_30 : f32 to vector<8x128xf32>
    %66 = arith.mulf %65, %64 : vector<8x128xf32>
    %67 = math.tanh %66 : vector<8x128xf32>
    %cst_31 = arith.constant 1.000000e+00 : f32
    %68 = vector.broadcast %cst_31 : f32 to vector<8x128xf32>
    %69 = arith.addf %67, %68 : vector<8x128xf32>
    %cst_32 = arith.constant 5.000000e-01 : f32
    %70 = vector.broadcast %cst_32 : f32 to vector<8x128xf32>
    %71 = arith.mulf %70, %69 : vector<8x128xf32>
    %72 = vector.extract_strided_slice %55 {offsets = [0, 256], sizes = [8, 128], strides = [1, 1]} : vector<8x512xf32> to vector<8x128xf32>
    %73 = math.tanh %72 : vector<8x128xf32>
    %74 = vector.extract_strided_slice %55 {offsets = [0, 384], sizes = [8, 128], strides = [1, 1]} : vector<8x512xf32> to vector<8x128xf32>
    %cst_33 = arith.constant 5.000000e-01 : f32
    %75 = vector.broadcast %cst_33 : f32 to vector<8x128xf32>
    %76 = arith.mulf %75, %74 : vector<8x128xf32>
    %77 = math.tanh %76 : vector<8x128xf32>
    %cst_34 = arith.constant 1.000000e+00 : f32
    %78 = vector.broadcast %cst_34 : f32 to vector<8x128xf32>
    %79 = arith.addf %77, %78 : vector<8x128xf32>
    %cst_35 = arith.constant 5.000000e-01 : f32
    %80 = vector.broadcast %cst_35 : f32 to vector<8x128xf32>
    %81 = arith.mulf %80, %79 : vector<8x128xf32>
    %82 = arith.mulf %71, %44 : vector<8x128xf32>
    %83 = arith.mulf %63, %73 : vector<8x128xf32>
    %84 = arith.addf %82, %83 : vector<8x128xf32>
    %85 = math.tanh %84 : vector<8x128xf32>
    %86 = arith.mulf %81, %85 : vector<8x128xf32>
    %87 = arith.truncf %86 : vector<8x128xf32> to vector<8x128xbf16>
    %c2_i32 = arith.constant 2 : i32
    %88 = arith.index_cast %c2_i32 : i32 to index
    %c0_36 = arith.constant 0 : index
    %c0_37 = arith.constant 0 : index
    %89 = vector.load %arg2[%88, %c0_36, %c0_37] : memref<8x8x16xbf16, #tpu.memory_space<vmem>>, vector<1x8x16xbf16>
    %90 = vector.shape_cast %89 : vector<1x8x16xbf16> to vector<8x16xbf16>
    %cst_38 = arith.constant dense<0.000000e+00> : vector<8x512xf32>
    %91 = tpu.matmul %90, %3, %cst_38 {dimension_numbers = #tpu.dot_dimension_numbers<[1], [0], [0], [1], [0, 0, 1, 1], [], []>} : vector<8x16xbf16>, vector<16x512xbf16>, vector<8x512xf32> -> vector<8x512xf32>
    %92 = vector.broadcast %5 : vector<1x512xf32> to vector<8x512xf32>
    %93 = arith.addf %91, %92 : vector<8x512xf32>
    %cst_39 = arith.constant dense<0.000000e+00> : vector<8x512xf32>
    %94 = tpu.matmul %87, %4, %cst_39 {dimension_numbers = #tpu.dot_dimension_numbers<[1], [0], [0], [1], [0, 0, 1, 1], [], []>} : vector<8x128xbf16>, vector<128x512xbf16>, vector<8x512xf32> -> vector<8x512xf32>
    %95 = arith.addf %93, %94 : vector<8x512xf32>
    %96 = vector.extract_strided_slice %95 {offsets = [0, 0], sizes = [8, 128], strides = [1, 1]} : vector<8x512xf32> to vector<8x128xf32>
    %cst_40 = arith.constant 5.000000e-01 : f32
    %97 = vector.broadcast %cst_40 : f32 to vector<8x128xf32>
    %98 = arith.mulf %97, %96 : vector<8x128xf32>
    %99 = math.tanh %98 : vector<8x128xf32>
    %cst_41 = arith.constant 1.000000e+00 : f32
    %100 = vector.broadcast %cst_41 : f32 to vector<8x128xf32>
    %101 = arith.addf %99, %100 : vector<8x128xf32>
    %cst_42 = arith.constant 5.000000e-01 : f32
    %102 = vector.broadcast %cst_42 : f32 to vector<8x128xf32>
    %103 = arith.mulf %102, %101 : vector<8x128xf32>
    %104 = vector.extract_strided_slice %95 {offsets = [0, 128], sizes = [8, 128], strides = [1, 1]} : vector<8x512xf32> to vector<8x128xf32>
    %cst_43 = arith.constant 5.000000e-01 : f32
    %105 = vector.broadcast %cst_43 : f32 to vector<8x128xf32>
    %106 = arith.mulf %105, %104 : vector<8x128xf32>
    %107 = math.tanh %106 : vector<8x128xf32>
    %cst_44 = arith.constant 1.000000e+00 : f32
    %108 = vector.broadcast %cst_44 : f32 to vector<8x128xf32>
    %109 = arith.addf %107, %108 : vector<8x128xf32>
    %cst_45 = arith.constant 5.000000e-01 : f32
    %110 = vector.broadcast %cst_45 : f32 to vector<8x128xf32>
    %111 = arith.mulf %110, %109 : vector<8x128xf32>
    %112 = vector.extract_strided_slice %95 {offsets = [0, 256], sizes = [8, 128], strides = [1, 1]} : vector<8x512xf32> to vector<8x128xf32>
    %113 = math.tanh %112 : vector<8x128xf32>
    %114 = vector.extract_strided_slice %95 {offsets = [0, 384], sizes = [8, 128], strides = [1, 1]} : vector<8x512xf32> to vector<8x128xf32>
    %cst_46 = arith.constant 5.000000e-01 : f32
    %115 = vector.broadcast %cst_46 : f32 to vector<8x128xf32>
    %116 = arith.mulf %115, %114 : vector<8x128xf32>
    %117 = math.tanh %116 : vector<8x128xf32>
    %cst_47 = arith.constant 1.000000e+00 : f32
    %118 = vector.broadcast %cst_47 : f32 to vector<8x128xf32>
    %119 = arith.addf %117, %118 : vector<8x128xf32>
    %cst_48 = arith.constant 5.000000e-01 : f32
    %120 = vector.broadcast %cst_48 : f32 to vector<8x128xf32>
    %121 = arith.mulf %120, %119 : vector<8x128xf32>
    %122 = arith.mulf %111, %84 : vector<8x128xf32>
    %123 = arith.mulf %103, %113 : vector<8x128xf32>
    %124 = arith.addf %122, %123 : vector<8x128xf32>
    %125 = math.tanh %124 : vector<8x128xf32>
    %126 = arith.mulf %121, %125 : vector<8x128xf32>
    %127 = arith.truncf %126 : vector<8x128xf32> to vector<8x128xbf16>
    %c3_i32 = arith.constant 3 : i32
    %128 = arith.index_cast %c3_i32 : i32 to index
    %c0_49 = arith.constant 0 : index
    %c0_50 = arith.constant 0 : index
    %129 = vector.load %arg2[%128, %c0_49, %c0_50] : memref<8x8x16xbf16, #tpu.memory_space<vmem>>, vector<1x8x16xbf16>
    %130 = vector.shape_cast %129 : vector<1x8x16xbf16> to vector<8x16xbf16>
    %cst_51 = arith.constant dense<0.000000e+00> : vector<8x512xf32>
    %131 = tpu.matmul %130, %3, %cst_51 {dimension_numbers = #tpu.dot_dimension_numbers<[1], [0], [0], [1], [0, 0, 1, 1], [], []>} : vector<8x16xbf16>, vector<16x512xbf16>, vector<8x512xf32> -> vector<8x512xf32>
    %132 = vector.broadcast %5 : vector<1x512xf32> to vector<8x512xf32>
    %133 = arith.addf %131, %132 : vector<8x512xf32>
    %cst_52 = arith.constant dense<0.000000e+00> : vector<8x512xf32>
    %134 = tpu.matmul %127, %4, %cst_52 {dimension_numbers = #tpu.dot_dimension_numbers<[1], [0], [0], [1], [0, 0, 1, 1], [], []>} : vector<8x128xbf16>, vector<128x512xbf16>, vector<8x512xf32> -> vector<8x512xf32>
    %135 = arith.addf %133, %134 : vector<8x512xf32>
    %136 = vector.extract_strided_slice %135 {offsets = [0, 0], sizes = [8, 128], strides = [1, 1]} : vector<8x512xf32> to vector<8x128xf32>
    %cst_53 = arith.constant 5.000000e-01 : f32
    %137 = vector.broadcast %cst_53 : f32 to vector<8x128xf32>
    %138 = arith.mulf %137, %136 : vector<8x128xf32>
    %139 = math.tanh %138 : vector<8x128xf32>
    %cst_54 = arith.constant 1.000000e+00 : f32
    %140 = vector.broadcast %cst_54 : f32 to vector<8x128xf32>
    %141 = arith.addf %139, %140 : vector<8x128xf32>
    %cst_55 = arith.constant 5.000000e-01 : f32
    %142 = vector.broadcast %cst_55 : f32 to vector<8x128xf32>
    %143 = arith.mulf %142, %141 : vector<8x128xf32>
    %144 = vector.extract_strided_slice %135 {offsets = [0, 128], sizes = [8, 128], strides = [1, 1]} : vector<8x512xf32> to vector<8x128xf32>
    %cst_56 = arith.constant 5.000000e-01 : f32
    %145 = vector.broadcast %cst_56 : f32 to vector<8x128xf32>
    %146 = arith.mulf %145, %144 : vector<8x128xf32>
    %147 = math.tanh %146 : vector<8x128xf32>
    %cst_57 = arith.constant 1.000000e+00 : f32
    %148 = vector.broadcast %cst_57 : f32 to vector<8x128xf32>
    %149 = arith.addf %147, %148 : vector<8x128xf32>
    %cst_58 = arith.constant 5.000000e-01 : f32
    %150 = vector.broadcast %cst_58 : f32 to vector<8x128xf32>
    %151 = arith.mulf %150, %149 : vector<8x128xf32>
    %152 = vector.extract_strided_slice %135 {offsets = [0, 256], sizes = [8, 128], strides = [1, 1]} : vector<8x512xf32> to vector<8x128xf32>
    %153 = math.tanh %152 : vector<8x128xf32>
    %154 = vector.extract_strided_slice %135 {offsets = [0, 384], sizes = [8, 128], strides = [1, 1]} : vector<8x512xf32> to vector<8x128xf32>
    %cst_59 = arith.constant 5.000000e-01 : f32
    %155 = vector.broadcast %cst_59 : f32 to vector<8x128xf32>
    %156 = arith.mulf %155, %154 : vector<8x128xf32>
    %157 = math.tanh %156 : vector<8x128xf32>
    %cst_60 = arith.constant 1.000000e+00 : f32
    %158 = vector.broadcast %cst_60 : f32 to vector<8x128xf32>
    %159 = arith.addf %157, %158 : vector<8x128xf32>
    %cst_61 = arith.constant 5.000000e-01 : f32
    %160 = vector.broadcast %cst_61 : f32 to vector<8x128xf32>
    %161 = arith.mulf %160, %159 : vector<8x128xf32>
    %162 = arith.mulf %151, %124 : vector<8x128xf32>
    %163 = arith.mulf %143, %153 : vector<8x128xf32>
    %164 = arith.addf %162, %163 : vector<8x128xf32>
    %165 = math.tanh %164 : vector<8x128xf32>
    %166 = arith.mulf %161, %165 : vector<8x128xf32>
    %167 = arith.truncf %166 : vector<8x128xf32> to vector<8x128xbf16>
    %c4_i32 = arith.constant 4 : i32
    %168 = arith.index_cast %c4_i32 : i32 to index
    %c0_62 = arith.constant 0 : index
    %c0_63 = arith.constant 0 : index
    %169 = vector.load %arg2[%168, %c0_62, %c0_63] : memref<8x8x16xbf16, #tpu.memory_space<vmem>>, vector<1x8x16xbf16>
    %170 = vector.shape_cast %169 : vector<1x8x16xbf16> to vector<8x16xbf16>
    %cst_64 = arith.constant dense<0.000000e+00> : vector<8x512xf32>
    %171 = tpu.matmul %170, %3, %cst_64 {dimension_numbers = #tpu.dot_dimension_numbers<[1], [0], [0], [1], [0, 0, 1, 1], [], []>} : vector<8x16xbf16>, vector<16x512xbf16>, vector<8x512xf32> -> vector<8x512xf32>
    %172 = vector.broadcast %5 : vector<1x512xf32> to vector<8x512xf32>
    %173 = arith.addf %171, %172 : vector<8x512xf32>
    %cst_65 = arith.constant dense<0.000000e+00> : vector<8x512xf32>
    %174 = tpu.matmul %167, %4, %cst_65 {dimension_numbers = #tpu.dot_dimension_numbers<[1], [0], [0], [1], [0, 0, 1, 1], [], []>} : vector<8x128xbf16>, vector<128x512xbf16>, vector<8x512xf32> -> vector<8x512xf32>
    %175 = arith.addf %173, %174 : vector<8x512xf32>
    %176 = vector.extract_strided_slice %175 {offsets = [0, 0], sizes = [8, 128], strides = [1, 1]} : vector<8x512xf32> to vector<8x128xf32>
    %cst_66 = arith.constant 5.000000e-01 : f32
    %177 = vector.broadcast %cst_66 : f32 to vector<8x128xf32>
    %178 = arith.mulf %177, %176 : vector<8x128xf32>
    %179 = math.tanh %178 : vector<8x128xf32>
    %cst_67 = arith.constant 1.000000e+00 : f32
    %180 = vector.broadcast %cst_67 : f32 to vector<8x128xf32>
    %181 = arith.addf %179, %180 : vector<8x128xf32>
    %cst_68 = arith.constant 5.000000e-01 : f32
    %182 = vector.broadcast %cst_68 : f32 to vector<8x128xf32>
    %183 = arith.mulf %182, %181 : vector<8x128xf32>
    %184 = vector.extract_strided_slice %175 {offsets = [0, 128], sizes = [8, 128], strides = [1, 1]} : vector<8x512xf32> to vector<8x128xf32>
    %cst_69 = arith.constant 5.000000e-01 : f32
    %185 = vector.broadcast %cst_69 : f32 to vector<8x128xf32>
    %186 = arith.mulf %185, %184 : vector<8x128xf32>
    %187 = math.tanh %186 : vector<8x128xf32>
    %cst_70 = arith.constant 1.000000e+00 : f32
    %188 = vector.broadcast %cst_70 : f32 to vector<8x128xf32>
    %189 = arith.addf %187, %188 : vector<8x128xf32>
    %cst_71 = arith.constant 5.000000e-01 : f32
    %190 = vector.broadcast %cst_71 : f32 to vector<8x128xf32>
    %191 = arith.mulf %190, %189 : vector<8x128xf32>
    %192 = vector.extract_strided_slice %175 {offsets = [0, 256], sizes = [8, 128], strides = [1, 1]} : vector<8x512xf32> to vector<8x128xf32>
    %193 = math.tanh %192 : vector<8x128xf32>
    %194 = vector.extract_strided_slice %175 {offsets = [0, 384], sizes = [8, 128], strides = [1, 1]} : vector<8x512xf32> to vector<8x128xf32>
    %cst_72 = arith.constant 5.000000e-01 : f32
    %195 = vector.broadcast %cst_72 : f32 to vector<8x128xf32>
    %196 = arith.mulf %195, %194 : vector<8x128xf32>
    %197 = math.tanh %196 : vector<8x128xf32>
    %cst_73 = arith.constant 1.000000e+00 : f32
    %198 = vector.broadcast %cst_73 : f32 to vector<8x128xf32>
    %199 = arith.addf %197, %198 : vector<8x128xf32>
    %cst_74 = arith.constant 5.000000e-01 : f32
    %200 = vector.broadcast %cst_74 : f32 to vector<8x128xf32>
    %201 = arith.mulf %200, %199 : vector<8x128xf32>
    %202 = arith.mulf %191, %164 : vector<8x128xf32>
    %203 = arith.mulf %183, %193 : vector<8x128xf32>
    %204 = arith.addf %202, %203 : vector<8x128xf32>
    %205 = math.tanh %204 : vector<8x128xf32>
    %206 = arith.mulf %201, %205 : vector<8x128xf32>
    %207 = arith.truncf %206 : vector<8x128xf32> to vector<8x128xbf16>
    %c5_i32 = arith.constant 5 : i32
    %208 = arith.index_cast %c5_i32 : i32 to index
    %c0_75 = arith.constant 0 : index
    %c0_76 = arith.constant 0 : index
    %209 = vector.load %arg2[%208, %c0_75, %c0_76] : memref<8x8x16xbf16, #tpu.memory_space<vmem>>, vector<1x8x16xbf16>
    %210 = vector.shape_cast %209 : vector<1x8x16xbf16> to vector<8x16xbf16>
    %cst_77 = arith.constant dense<0.000000e+00> : vector<8x512xf32>
    %211 = tpu.matmul %210, %3, %cst_77 {dimension_numbers = #tpu.dot_dimension_numbers<[1], [0], [0], [1], [0, 0, 1, 1], [], []>} : vector<8x16xbf16>, vector<16x512xbf16>, vector<8x512xf32> -> vector<8x512xf32>
    %212 = vector.broadcast %5 : vector<1x512xf32> to vector<8x512xf32>
    %213 = arith.addf %211, %212 : vector<8x512xf32>
    %cst_78 = arith.constant dense<0.000000e+00> : vector<8x512xf32>
    %214 = tpu.matmul %207, %4, %cst_78 {dimension_numbers = #tpu.dot_dimension_numbers<[1], [0], [0], [1], [0, 0, 1, 1], [], []>} : vector<8x128xbf16>, vector<128x512xbf16>, vector<8x512xf32> -> vector<8x512xf32>
    %215 = arith.addf %213, %214 : vector<8x512xf32>
    %216 = vector.extract_strided_slice %215 {offsets = [0, 0], sizes = [8, 128], strides = [1, 1]} : vector<8x512xf32> to vector<8x128xf32>
    %cst_79 = arith.constant 5.000000e-01 : f32
    %217 = vector.broadcast %cst_79 : f32 to vector<8x128xf32>
    %218 = arith.mulf %217, %216 : vector<8x128xf32>
    %219 = math.tanh %218 : vector<8x128xf32>
    %cst_80 = arith.constant 1.000000e+00 : f32
    %220 = vector.broadcast %cst_80 : f32 to vector<8x128xf32>
    %221 = arith.addf %219, %220 : vector<8x128xf32>
    %cst_81 = arith.constant 5.000000e-01 : f32
    %222 = vector.broadcast %cst_81 : f32 to vector<8x128xf32>
    %223 = arith.mulf %222, %221 : vector<8x128xf32>
    %224 = vector.extract_strided_slice %215 {offsets = [0, 128], sizes = [8, 128], strides = [1, 1]} : vector<8x512xf32> to vector<8x128xf32>
    %cst_82 = arith.constant 5.000000e-01 : f32
    %225 = vector.broadcast %cst_82 : f32 to vector<8x128xf32>
    %226 = arith.mulf %225, %224 : vector<8x128xf32>
    %227 = math.tanh %226 : vector<8x128xf32>
    %cst_83 = arith.constant 1.000000e+00 : f32
    %228 = vector.broadcast %cst_83 : f32 to vector<8x128xf32>
    %229 = arith.addf %227, %228 : vector<8x128xf32>
    %cst_84 = arith.constant 5.000000e-01 : f32
    %230 = vector.broadcast %cst_84 : f32 to vector<8x128xf32>
    %231 = arith.mulf %230, %229 : vector<8x128xf32>
    %232 = vector.extract_strided_slice %215 {offsets = [0, 256], sizes = [8, 128], strides = [1, 1]} : vector<8x512xf32> to vector<8x128xf32>
    %233 = math.tanh %232 : vector<8x128xf32>
    %234 = vector.extract_strided_slice %215 {offsets = [0, 384], sizes = [8, 128], strides = [1, 1]} : vector<8x512xf32> to vector<8x128xf32>
    %cst_85 = arith.constant 5.000000e-01 : f32
    %235 = vector.broadcast %cst_85 : f32 to vector<8x128xf32>
    %236 = arith.mulf %235, %234 : vector<8x128xf32>
    %237 = math.tanh %236 : vector<8x128xf32>
    %cst_86 = arith.constant 1.000000e+00 : f32
    %238 = vector.broadcast %cst_86 : f32 to vector<8x128xf32>
    %239 = arith.addf %237, %238 : vector<8x128xf32>
    %cst_87 = arith.constant 5.000000e-01 : f32
    %240 = vector.broadcast %cst_87 : f32 to vector<8x128xf32>
    %241 = arith.mulf %240, %239 : vector<8x128xf32>
    %242 = arith.mulf %231, %204 : vector<8x128xf32>
    %243 = arith.mulf %223, %233 : vector<8x128xf32>
    %244 = arith.addf %242, %243 : vector<8x128xf32>
    %245 = math.tanh %244 : vector<8x128xf32>
    %246 = arith.mulf %241, %245 : vector<8x128xf32>
    %247 = arith.truncf %246 : vector<8x128xf32> to vector<8x128xbf16>
    %c6_i32 = arith.constant 6 : i32
    %248 = arith.index_cast %c6_i32 : i32 to index
    %c0_88 = arith.constant 0 : index
    %c0_89 = arith.constant 0 : index
    %249 = vector.load %arg2[%248, %c0_88, %c0_89] : memref<8x8x16xbf16, #tpu.memory_space<vmem>>, vector<1x8x16xbf16>
    %250 = vector.shape_cast %249 : vector<1x8x16xbf16> to vector<8x16xbf16>
    %cst_90 = arith.constant dense<0.000000e+00> : vector<8x512xf32>
    %251 = tpu.matmul %250, %3, %cst_90 {dimension_numbers = #tpu.dot_dimension_numbers<[1], [0], [0], [1], [0, 0, 1, 1], [], []>} : vector<8x16xbf16>, vector<16x512xbf16>, vector<8x512xf32> -> vector<8x512xf32>
    %252 = vector.broadcast %5 : vector<1x512xf32> to vector<8x512xf32>
    %253 = arith.addf %251, %252 : vector<8x512xf32>
    %cst_91 = arith.constant dense<0.000000e+00> : vector<8x512xf32>
    %254 = tpu.matmul %247, %4, %cst_91 {dimension_numbers = #tpu.dot_dimension_numbers<[1], [0], [0], [1], [0, 0, 1, 1], [], []>} : vector<8x128xbf16>, vector<128x512xbf16>, vector<8x512xf32> -> vector<8x512xf32>
    %255 = arith.addf %253, %254 : vector<8x512xf32>
    %256 = vector.extract_strided_slice %255 {offsets = [0, 0], sizes = [8, 128], strides = [1, 1]} : vector<8x512xf32> to vector<8x128xf32>
    %cst_92 = arith.constant 5.000000e-01 : f32
    %257 = vector.broadcast %cst_92 : f32 to vector<8x128xf32>
    %258 = arith.mulf %257, %256 : vector<8x128xf32>
    %259 = math.tanh %258 : vector<8x128xf32>
    %cst_93 = arith.constant 1.000000e+00 : f32
    %260 = vector.broadcast %cst_93 : f32 to vector<8x128xf32>
    %261 = arith.addf %259, %260 : vector<8x128xf32>
    %cst_94 = arith.constant 5.000000e-01 : f32
    %262 = vector.broadcast %cst_94 : f32 to vector<8x128xf32>
    %263 = arith.mulf %262, %261 : vector<8x128xf32>
    %264 = vector.extract_strided_slice %255 {offsets = [0, 128], sizes = [8, 128], strides = [1, 1]} : vector<8x512xf32> to vector<8x128xf32>
    %cst_95 = arith.constant 5.000000e-01 : f32
    %265 = vector.broadcast %cst_95 : f32 to vector<8x128xf32>
    %266 = arith.mulf %265, %264 : vector<8x128xf32>
    %267 = math.tanh %266 : vector<8x128xf32>
    %cst_96 = arith.constant 1.000000e+00 : f32
    %268 = vector.broadcast %cst_96 : f32 to vector<8x128xf32>
    %269 = arith.addf %267, %268 : vector<8x128xf32>
    %cst_97 = arith.constant 5.000000e-01 : f32
    %270 = vector.broadcast %cst_97 : f32 to vector<8x128xf32>
    %271 = arith.mulf %270, %269 : vector<8x128xf32>
    %272 = vector.extract_strided_slice %255 {offsets = [0, 256], sizes = [8, 128], strides = [1, 1]} : vector<8x512xf32> to vector<8x128xf32>
    %273 = math.tanh %272 : vector<8x128xf32>
    %274 = vector.extract_strided_slice %255 {offsets = [0, 384], sizes = [8, 128], strides = [1, 1]} : vector<8x512xf32> to vector<8x128xf32>
    %cst_98 = arith.constant 5.000000e-01 : f32
    %275 = vector.broadcast %cst_98 : f32 to vector<8x128xf32>
    %276 = arith.mulf %275, %274 : vector<8x128xf32>
    %277 = math.tanh %276 : vector<8x128xf32>
    %cst_99 = arith.constant 1.000000e+00 : f32
    %278 = vector.broadcast %cst_99 : f32 to vector<8x128xf32>
    %279 = arith.addf %277, %278 : vector<8x128xf32>
    %cst_100 = arith.constant 5.000000e-01 : f32
    %280 = vector.broadcast %cst_100 : f32 to vector<8x128xf32>
    %281 = arith.mulf %280, %279 : vector<8x128xf32>
    %282 = arith.mulf %271, %244 : vector<8x128xf32>
    %283 = arith.mulf %263, %273 : vector<8x128xf32>
    %284 = arith.addf %282, %283 : vector<8x128xf32>
    %285 = math.tanh %284 : vector<8x128xf32>
    %286 = arith.mulf %281, %285 : vector<8x128xf32>
    %287 = arith.truncf %286 : vector<8x128xf32> to vector<8x128xbf16>
    %c7_i32 = arith.constant 7 : i32
    %288 = arith.index_cast %c7_i32 : i32 to index
    %c0_101 = arith.constant 0 : index
    %c0_102 = arith.constant 0 : index
    %289 = vector.load %arg2[%288, %c0_101, %c0_102] : memref<8x8x16xbf16, #tpu.memory_space<vmem>>, vector<1x8x16xbf16>
    %290 = vector.shape_cast %289 : vector<1x8x16xbf16> to vector<8x16xbf16>
    %cst_103 = arith.constant dense<0.000000e+00> : vector<8x512xf32>
    %291 = tpu.matmul %290, %3, %cst_103 {dimension_numbers = #tpu.dot_dimension_numbers<[1], [0], [0], [1], [0, 0, 1, 1], [], []>} : vector<8x16xbf16>, vector<16x512xbf16>, vector<8x512xf32> -> vector<8x512xf32>
    %292 = vector.broadcast %5 : vector<1x512xf32> to vector<8x512xf32>
    %293 = arith.addf %291, %292 : vector<8x512xf32>
    %cst_104 = arith.constant dense<0.000000e+00> : vector<8x512xf32>
    %294 = tpu.matmul %287, %4, %cst_104 {dimension_numbers = #tpu.dot_dimension_numbers<[1], [0], [0], [1], [0, 0, 1, 1], [], []>} : vector<8x128xbf16>, vector<128x512xbf16>, vector<8x512xf32> -> vector<8x512xf32>
    %295 = arith.addf %293, %294 : vector<8x512xf32>
    %296 = vector.extract_strided_slice %295 {offsets = [0, 0], sizes = [8, 128], strides = [1, 1]} : vector<8x512xf32> to vector<8x128xf32>
    %cst_105 = arith.constant 5.000000e-01 : f32
    %297 = vector.broadcast %cst_105 : f32 to vector<8x128xf32>
    %298 = arith.mulf %297, %296 : vector<8x128xf32>
    %299 = math.tanh %298 : vector<8x128xf32>
    %cst_106 = arith.constant 1.000000e+00 : f32
    %300 = vector.broadcast %cst_106 : f32 to vector<8x128xf32>
    %301 = arith.addf %299, %300 : vector<8x128xf32>
    %cst_107 = arith.constant 5.000000e-01 : f32
    %302 = vector.broadcast %cst_107 : f32 to vector<8x128xf32>
    %303 = arith.mulf %302, %301 : vector<8x128xf32>
    %304 = vector.extract_strided_slice %295 {offsets = [0, 128], sizes = [8, 128], strides = [1, 1]} : vector<8x512xf32> to vector<8x128xf32>
    %cst_108 = arith.constant 5.000000e-01 : f32
    %305 = vector.broadcast %cst_108 : f32 to vector<8x128xf32>
    %306 = arith.mulf %305, %304 : vector<8x128xf32>
    %307 = math.tanh %306 : vector<8x128xf32>
    %cst_109 = arith.constant 1.000000e+00 : f32
    %308 = vector.broadcast %cst_109 : f32 to vector<8x128xf32>
    %309 = arith.addf %307, %308 : vector<8x128xf32>
    %cst_110 = arith.constant 5.000000e-01 : f32
    %310 = vector.broadcast %cst_110 : f32 to vector<8x128xf32>
    %311 = arith.mulf %310, %309 : vector<8x128xf32>
    %312 = vector.extract_strided_slice %295 {offsets = [0, 256], sizes = [8, 128], strides = [1, 1]} : vector<8x512xf32> to vector<8x128xf32>
    %313 = math.tanh %312 : vector<8x128xf32>
    %314 = vector.extract_strided_slice %295 {offsets = [0, 384], sizes = [8, 128], strides = [1, 1]} : vector<8x512xf32> to vector<8x128xf32>
    %cst_111 = arith.constant 5.000000e-01 : f32
    %315 = vector.broadcast %cst_111 : f32 to vector<8x128xf32>
    %316 = arith.mulf %315, %314 : vector<8x128xf32>
    %317 = math.tanh %316 : vector<8x128xf32>
    %cst_112 = arith.constant 1.000000e+00 : f32
    %318 = vector.broadcast %cst_112 : f32 to vector<8x128xf32>
    %319 = arith.addf %317, %318 : vector<8x128xf32>
    %cst_113 = arith.constant 5.000000e-01 : f32
    %320 = vector.broadcast %cst_113 : f32 to vector<8x128xf32>
    %321 = arith.mulf %320, %319 : vector<8x128xf32>
    %322 = arith.mulf %311, %284 : vector<8x128xf32>
    %323 = arith.mulf %303, %313 : vector<8x128xf32>
    %324 = arith.addf %322, %323 : vector<8x128xf32>
    %325 = math.tanh %324 : vector<8x128xf32>
    %326 = arith.mulf %321, %325 : vector<8x128xf32>
    %327 = arith.truncf %326 : vector<8x128xf32> to vector<8x128xbf16>
    %c8_i32 = arith.constant 8 : i32
    %c0_114 = arith.constant 0 : index
    %c0_115 = arith.constant 0 : index
    %328 = vector.load %arg9[%c0_114, %c0_115] : memref<8x128xbf16, #tpu.memory_space<vmem>>, vector<8x128xbf16>
    tpu.vector_store %arg9[%c0_114, %c0_115], %327 {strides = array<i32>} : memref<8x128xbf16, #tpu.memory_space<vmem>>, vector<8x128xbf16>,
    %c0_116 = arith.constant 0 : index
    %c0_117 = arith.constant 0 : index
    %329 = vector.load %arg10[%c0_116, %c0_117] : memref<8x128xf32, #tpu.memory_space<vmem>>, vector<8x128xf32>
    tpu.vector_store %arg10[%c0_116, %c0_117], %324 {strides = array<i32>} : memref<8x128xf32, #tpu.memory_space<vmem>>, vector<8x128xf32>,
    %c0_i32_118 = arith.constant 0 : i32
    %330 = arith.cmpi eq, %arg1, %c0_i32_118 : i32
    %331 = arith.extui %330 : i1 to i32
    %c0_i32_119 = arith.constant 0 : i32
    %332 = arith.cmpi ne, %331, %c0_i32_119 : i32
    scf.if %332 {
      %333 = arith.extf %327 : vector<8x128xbf16> to vector<8x128xf32>
      %c0_120 = arith.constant 0 : index
      %c0_121 = arith.constant 0 : index
      %334 = vector.load %arg6[%c0_120, %c0_121] : memref<1x128xf32, #tpu.memory_space<vmem>>, vector<1x128xf32>
      %335 = vector.broadcast %334 : vector<1x128xf32> to vector<8x128xf32>
      %336 = arith.mulf %333, %335 : vector<8x128xf32>
      %cst_122 = arith.constant dense<0.000000e+00> : vector<8xf32>
      %337 = vector.multi_reduction <add>, %336, %cst_122 [1] : vector<8x128xf32> to vector<8xf32>
      %338 = vector.shape_cast %337 : vector<8xf32> to vector<8x1xf32>
      %c0_123 = arith.constant 0 : index
      %c0_124 = arith.constant 0 : index
      %339 = vector.load %arg7[%c0_123, %c0_124] : memref<1x1xf32, #tpu.memory_space<vmem>>, vector<1x1xf32>
      %340 = vector.broadcast %339 : vector<1x1xf32> to vector<8x1xf32>
      %341 = arith.addf %338, %340 : vector<8x1xf32>
      %c0_125 = arith.constant 0 : index
      %c0_126 = arith.constant 0 : index
      %342 = vector.load %arg8[%c0_125, %c0_126] : memref<8x1xf32, #tpu.memory_space<vmem>>, vector<8x1xf32>
      tpu.vector_store %arg8[%c0_125, %c0_126], %341 {strides = array<i32>} : memref<8x1xf32, #tpu.memory_space<vmem>>, vector<8x1xf32>,
    } else {
    }
    return
  }
  func.func @transform_0(%arg0: i32, %arg1: i32) -> (i32, i32, i32) {
    %c0_i32 = arith.constant 0 : i32
    %c0_i32_0 = arith.constant 0 : i32
    return %arg1, %arg0, %c0_i32 : i32, i32, i32
  }
  func.func @transform_1(%arg0: i32, %arg1: i32) -> (i32, i32) {
    %c0_i32 = arith.constant 0 : i32
    %c0_i32_0 = arith.constant 0 : i32
    %c0_i32_1 = arith.constant 0 : i32
    return %c0_i32, %c0_i32_0 : i32, i32
  }
  func.func @transform_2(%arg0: i32, %arg1: i32) -> (i32, i32) {
    %c0_i32 = arith.constant 0 : i32
    %c0_i32_0 = arith.constant 0 : i32
    %c0_i32_1 = arith.constant 0 : i32
    return %c0_i32, %c0_i32_0 : i32, i32
  }
  func.func @transform_3(%arg0: i32, %arg1: i32) -> (i32, i32) {
    %c0_i32 = arith.constant 0 : i32
    %c0_i32_0 = arith.constant 0 : i32
    %c0_i32_1 = arith.constant 0 : i32
    return %c0_i32, %c0_i32_0 : i32, i32
  }
  func.func @transform_4(%arg0: i32, %arg1: i32) -> (i32, i32) {
    %c0_i32 = arith.constant 0 : i32
    %c0_i32_0 = arith.constant 0 : i32
    %c0_i32_1 = arith.constant 0 : i32
    return %c0_i32, %c0_i32_0 : i32, i32
  }
  func.func @transform_5(%arg0: i32, %arg1: i32) -> (i32, i32) {
    %c0_i32 = arith.constant 0 : i32
    %c0_i32_0 = arith.constant 0 : i32
    %c0_i32_1 = arith.constant 0 : i32
    return %c0_i32, %c0_i32_0 : i32, i32
  }
  func.func @transform_6(%arg0: i32, %arg1: i32) -> (i32, i32) {
    %c0_i32 = arith.constant 0 : i32
    %c0_i32_0 = arith.constant 0 : i32
    return %arg0, %c0_i32 : i32, i32
  }
}

</mosaic_0001>

<llo_original>
// kernel: lstm_forward.1
$region0: #{lstm_forward.1}
  #allocation0 [shape = 'u32[]', space=smem, size = 0x4, offset = 0x4, fixed_abs, tag = 'smem constant byte address 0x4 - core index']
  #allocation1 [shape = 'u32[144,128]{1,0:T(1,128)}', space=vmem, size = 0x12000, scoped, tag = 'internal scratch']
  #allocation2 [shape = 'bf16[8,128]{1,0:T(8,128)(2,1)}', space=vmem, size = 0x800, scoped, tag = 'scratch operand']
  #allocation3 [shape = 'f32[8,128]{1,0:T(8,128)}', space=vmem, size = 0x1000, scoped, tag = 'scratch operand']
  #allocation4 [shape = 'f32[1,1]{1,0:T(1,128)S(1)}', space=vmem, size = 0x200, scoped, tag = 'scoped memory for lstm_forward.1']
  %s0 = inlined_call_operand.vmem [shape: bf16[8,8,16], index: 0, kind: input, shape index: {}]
  %s1 = inlined_call_operand.vmem [shape: bf16[16,512], index: 1, kind: input, shape index: {}]
  %s2 = inlined_call_operand.vmem [shape: f32[1,512], index: 2, kind: input, shape index: {}]
  %s3 = inlined_call_operand.vmem [shape: bf16[128,512], index: 3, kind: input, shape index: {}]
  %s4 = inlined_call_operand.vmem [shape: f32[1,128], index: 4, kind: input, shape index: {}]
  %s5 = inlined_call_operand.<no memory space> [shape: f32[1,1], index: 5, kind: input, shape index: {}]
  %s6 = inlined_call_operand.vmem [shape: f32[8,1], index: 6, kind: output, shape index: {}]
  %s7 = sld [smem:[#allocation0]]
  $region42: #{lstm_forward.1} parent=0
    _
  %s9 = ssub.s32 1, %s7
  %s10 = scalar_select 0, %s9, %s7
  %v11 = vstv %s5
  %12 = vst [vmem:[#allocation4] sm:$0x1] %v11
  // Predicated region
  $region2: #{lstm_forward.1} parent=0 // pred_check
    _
  $region3: #{lstm_forward.1} parent=0 // pred_check_branch
    %14 = sbr.rel (0) target = $region5
  $region4: #{lstm_forward.1} parent=0 // pred_region
    _
  $region5: #{lstm_forward.1} parent=0 // pred_fallthru
    _
  // Predicated region
  $region6: #{lstm_forward.1} parent=0 // pred_check
    _
  $region7: #{lstm_forward.1} parent=0 // pred_check_branch
    %16 = sbr.rel (0) target = $region9
  $region8: #{lstm_forward.1} parent=0 // pred_region
    _
  $region9: #{lstm_forward.1} parent=0 // pred_fallthru
    _
  // Predicated region
  $region10: #{lstm_forward.1} parent=0 // pred_check
    _
  $region11: #{lstm_forward.1} parent=0 // pred_check_branch
    %18 = sbr.rel (0) target = $region13
  $region12: #{lstm_forward.1} parent=0 // pred_region
    _
  $region13: #{lstm_forward.1} parent=0 // pred_fallthru
    _
  // Predicated region
  $region14: #{lstm_forward.1} parent=0 // pred_check
    _
  $region15: #{lstm_forward.1} parent=0 // pred_check_branch
    %20 = sbr.rel (0) target = $region17
  $region16: #{lstm_forward.1} parent=0 // pred_region
    _
  $region17: #{lstm_forward.1} parent=0 // pred_fallthru
    _
  // Predicated region
  $region18: #{lstm_forward.1} parent=0 // pred_check
    _
  $region19: #{lstm_forward.1} parent=0 // pred_check_branch
    %22 = sbr.rel (0) target = $region21
  $region20: #{lstm_forward.1} parent=0 // pred_region
    _
  $region21: #{lstm_forward.1} parent=0 // pred_fallthru
    _
  // Predicated region
  $region22: #{lstm_forward.1} parent=0 // pred_check
    _
  $region23: #{lstm_forward.1} parent=0 // pred_check_branch
    %24 = sbr.rel (0) target = $region25
  $region24: #{lstm_forward.1} parent=0 // pred_region
    _
  $region25: #{lstm_forward.1} parent=0 // pred_fallthru
    _
  %p26 = scmp.eq.s32.totalorder 0, 0
  // Predicated region
  $region26: #{lstm_forward.1} parent=0 // pred_check
    %p27 = pneg %p26
  $region27: #{lstm_forward.1} parent=0 // pred_check_branch
    %29 = sbr.rel (%p27) target = $region29
  $region28: #{lstm_forward.1} parent=0 // pred_region
    %30 = vst [vmem:[#allocation2] sm:$0xf] 0
    %31 = vst [vmem:[#allocation3] sm:$0xff] 0.0
  $region29: #{lstm_forward.1} parent=0 // pred_fallthru
    _
  %v32 = vld [vmem:[%s1] sm:$0xff]
  %v33 = vld [vmem:[%s1 + $0x8] sm:$0xff]
  %v34 = vld [vmem:[%s1 + $0x10] sm:$0xff]
  %v35 = vld [vmem:[%s1 + $0x18] sm:$0xff]
  %v36 = vld [vmem:[%s3] sm:$0xff]
  %v37 = vld [vmem:[%s3 + $0x8] sm:$0xff]
  %v38 = vld [vmem:[%s3 + $0x10] sm:$0xff]
  %v39 = vld [vmem:[%s3 + $0x18] sm:$0xff]
  %v40 = vld [vmem:[%s3 + $0x20] sm:$0xff]
  %v41 = vld [vmem:[%s3 + $0x28] sm:$0xff]
  %v42 = vld [vmem:[%s3 + $0x30] sm:$0xff]
  %v43 = vld [vmem:[%s3 + $0x38] sm:$0xff]
  %v44 = vld [vmem:[%s3 + $0x40] sm:$0xff]
  %v45 = vld [vmem:[%s3 + $0x48] sm:$0xff]
  %v46 = vld [vmem:[%s3 + $0x50] sm:$0xff]
  %v47 = vld [vmem:[%s3 + $0x58] sm:$0xff]
  %v48 = vld [vmem:[%s3 + $0x60] sm:$0xff]
  %v49 = vld [vmem:[%s3 + $0x68] sm:$0xff]
  %v50 = vld [vmem:[%s3 + $0x70] sm:$0xff]
  %v51 = vld [vmem:[%s3 + $0x78] sm:$0xff]
  %v52 = vld [vmem:[%s3 + $0x80] sm:$0xff]
  %v53 = vld [vmem:[%s3 + $0x88] sm:$0xff]
  %v54 = vld [vmem:[%s3 + $0x90] sm:$0xff]
  %v55 = vld [vmem:[%s3 + $0x98] sm:$0xff]
  %v56 = vld [vmem:[%s3 + $0xa0] sm:$0xff]
  %v57 = vld [vmem:[%s3 + $0xa8] sm:$0xff]
  %v58 = vld [vmem:[%s3 + $0xb0] sm:$0xff]
  %v59 = vld [vmem:[%s3 + $0xb8] sm:$0xff]
  %v60 = vld [vmem:[%s3 + $0xc0] sm:$0xff]
  %v61 = vld [vmem:[%s3 + $0xc8] sm:$0xff]
  %v62 = vld [vmem:[%s3 + $0xd0] sm:$0xff]
  %v63 = vld [vmem:[%s3 + $0xd8] sm:$0xff]
  %v64 = vld [vmem:[%s3 + $0xe0] sm:$0xff]
  %v65 = vld [vmem:[%s3 + $0xe8] sm:$0xff]
  %v66 = vld [vmem:[%s3 + $0xf0] sm:$0xff]
  %v67 = vld [vmem:[%s3 + $0xf8] sm:$0xff]
  %v68 = vld [vmem:[%s2] sm:$0xf]
  %v69 = vld [vmem:[#allocation2] sm:$0xf]
  %v70 = vld [vmem:[#allocation3] sm:$0xff]
  %v71 = vld [vmem:[%s0] sm:$0xf]
  %v73 = vlaneseq
  %v74 = vshrl.u32 %v73, 7
  %v75 = vsub.s32 0, %v74
  %v76 = vrot.slane %v68, %v75
  %v77 = vlaneseq
  %v78 = vshrl.u32 %v77, 7
  %v79 = vsub.s32 1, %v78
  %v80 = vrot.slane %v68, %v79
  %v81 = vlaneseq
  %v82 = vshrl.u32 %v81, 7
  %v83 = vsub.s32 2, %v82
  %v84 = vrot.slane %v68, %v83
  %v85 = vlaneseq
  %v86 = vshrl.u32 %v85, 7
  %v87 = vsub.s32 3, %v86
  %v88 = vrot.slane %v68, %v87
  %v97 = vunpack.c.l.b16 %v32
  %v98 = vunpack.c.h.b16 %v32
  %v99 = vunpack.c.l.b16 %v33
  %v100 = vunpack.c.h.b16 %v33
  %v101 = vunpack.c.l.b16 %v34
  %v102 = vunpack.c.h.b16 %v34
  %v103 = vunpack.c.l.b16 %v35
  %v104 = vunpack.c.h.b16 %v35
  %v105 = vpack.c.b16 %v101, %v97
  %v106 = vpack.c.b16 %v102, %v98
  %v107 = vpack.c.b16 %v103, %v99
  %v108 = vpack.c.b16 %v104, %v100
  %vm113 = vcmask 130048
  %v115 = vsel %vm113, %v71, 0
  %117 = vmatprep.subr.bf16.mxu0 %v106
  %118 = vmatpush1.bf16.msra.mxu0 %v105
  %119 = vmatprep.subr.bf16.mxu0 0
  %120 = vmatpush1.bf16.msra.mxu0 0
  %121 = vmatprep.subr.bf16.mxu0 0
  %122 = vmatpush1.bf16.msra.mxu0 0
  %123 = vmatprep.subr.bf16.mxu0 0
  %124 = vmatpush1.bf16.msra.mxu0 0
  %125 = vmatprep.subr.bf16.mxu0 0
  %126 = vmatpush1.bf16.msra.mxu0 0
  %127 = vmatprep.subr.bf16.mxu0 0
  %128 = vmatpush1.bf16.msra.mxu0 0
  %129 = vmatprep.subr.bf16.mxu0 0
  %130 = vmatpush1.bf16.msra.mxu0 0
  %131 = vmatprep.subr.bf16.mxu0 0
  %132 = vmatpush1.bf16.msra.mxu0 0
  %133 = vmatprep.subr.bf16.mxu0 0
  %134 = vmatpush1.bf16.msra.mxu0 0
  %135 = vmatprep.subr.bf16.mxu0 0
  %136 = vmatpush1.bf16.msra.mxu0 0
  %137 = vmatprep.subr.bf16.mxu0 0
  %138 = vmatpush1.bf16.msra.mxu0 0
  %139 = vmatprep.subr.bf16.mxu0 0
  %140 = vmatpush1.bf16.msra.mxu0 0
  %141 = vmatprep.subr.bf16.mxu0 0
  %142 = vmatpush1.bf16.msra.mxu0 0
  %143 = vmatprep.subr.bf16.mxu0 0
  %144 = vmatpush1.bf16.msra.mxu0 0
  %145 = vmatprep.subr.bf16.mxu0 0
  %146 = vmatpush1.bf16.msra.mxu0 0
  %147 = vmatprep.subr.bf16.mxu0 0
  %148 = vmatpush1.bf16.msra.mxu0 0
  %149 = vmatprep.mubr.bf16.mxu0 0
  %150 = vmatmul.mubr.bf16.gmra.mrb[0].mxu0 %v115
  %v151 = vpop.f32.mrb[0].mxu0
  %v152 = vadd.f32 %v76, %v151
  %v153 = vpop.f32.mrb[0].mxu0
  %v154 = vadd.f32 %v80, %v153
  %v155 = vpop.f32.mrb[0].mxu0
  %v156 = vpop.f32.mrb[0].mxu0
  %157 = vdwg.mxu0
  %158 = vmatprep.subr.bf16.mxu0 %v108
  %159 = vmatpush1.bf16.msra.mxu0 %v107
  %160 = vmatprep.subr.bf16.mxu0 0
  %161 = vmatpush1.bf16.msra.mxu0 0
  %162 = vmatprep.subr.bf16.mxu0 0
  %163 = vmatpush1.bf16.msra.mxu0 0
  %164 = vmatprep.subr.bf16.mxu0 0
  %165 = vmatpush1.bf16.msra.mxu0 0
  %166 = vmatprep.subr.bf16.mxu0 0
  %167 = vmatpush1.bf16.msra.mxu0 0
  %168 = vmatprep.subr.bf16.mxu0 0
  %169 = vmatpush1.bf16.msra.mxu0 0
  %170 = vmatprep.subr.bf16.mxu0 0
  %171 = vmatpush1.bf16.msra.mxu0 0
  %172 = vmatprep.subr.bf16.mxu0 0
  %173 = vmatpush1.bf16.msra.mxu0 0
  %174 = vmatprep.subr.bf16.mxu0 0
  %175 = vmatpush1.bf16.msra.mxu0 0
  %176 = vmatprep.subr.bf16.mxu0 0
  %177 = vmatpush1.bf16.msra.mxu0 0
  %178 = vmatprep.subr.bf16.mxu0 0
  %179 = vmatpush1.bf16.msra.mxu0 0
  %180 = vmatprep.subr.bf16.mxu0 0
  %181 = vmatpush1.bf16.msra.mxu0 0
  %182 = vmatprep.subr.bf16.mxu0 0
  %183 = vmatpush1.bf16.msra.mxu0 0
  %184 = vmatprep.subr.bf16.mxu0 0
  %185 = vmatpush1.bf16.msra.mxu0 0
  %186 = vmatprep.subr.bf16.mxu0 0
  %187 = vmatpush1.bf16.msra.mxu0 0
  %188 = vmatprep.subr.bf16.mxu0 0
  %189 = vmatpush1.bf16.msra.mxu0 0
  %190 = vmatprep.mubr.bf16.mxu0 0
  %191 = vmatmul.mubr.bf16.gmra.mrb[0].mxu0 %v115
  %v192 = vpop.f32.mrb[0].mxu0
  %v193 = vadd.f32 %v84, %v192
  %v194 = vpop.f32.mrb[0].mxu0
  %v195 = vadd.f32 %v88, %v194
  %v196 = vpop.f32.mrb[0].mxu0
  %v197 = vpop.f32.mrb[0].mxu0
  %198 = vdwg.mxu0
  %v231 = vunpack.c.l.b16 %v36
  %v232 = vunpack.c.h.b16 %v36
  %v233 = vunpack.c.l.b16 %v37
  %v234 = vunpack.c.h.b16 %v37
  %v235 = vunpack.c.l.b16 %v38
  %v236 = vunpack.c.h.b16 %v38
  %v237 = vunpack.c.l.b16 %v39
  %v238 = vunpack.c.h.b16 %v39
  %v239 = vunpack.c.l.b16 %v40
  %v240 = vunpack.c.h.b16 %v40
  %v241 = vunpack.c.l.b16 %v41
  %v242 = vunpack.c.h.b16 %v41
  %v243 = vunpack.c.l.b16 %v42
  %v244 = vunpack.c.h.b16 %v42
  %v245 = vunpack.c.l.b16 %v43
  %v246 = vunpack.c.h.b16 %v43
  %v247 = vunpack.c.l.b16 %v44
  %v248 = vunpack.c.h.b16 %v44
  %v249 = vunpack.c.l.b16 %v45
  %v250 = vunpack.c.h.b16 %v45
  %v251 = vunpack.c.l.b16 %v46
  %v252 = vunpack.c.h.b16 %v46
  %v253 = vunpack.c.l.b16 %v47
  %v254 = vunpack.c.h.b16 %v47
  %v255 = vunpack.c.l.b16 %v48
  %v256 = vunpack.c.h.b16 %v48
  %v257 = vunpack.c.l.b16 %v49
  %v258 = vunpack.c.h.b16 %v49
  %v259 = vunpack.c.l.b16 %v50
  %v260 = vunpack.c.h.b16 %v50
  %v261 = vunpack.c.l.b16 %v51
  %v262 = vunpack.c.h.b16 %v51
  %v263 = vunpack.c.l.b16 %v52
  %v264 = vunpack.c.h.b16 %v52
  %v265 = vunpack.c.l.b16 %v53
  %v266 = vunpack.c.h.b16 %v53
  %v267 = vunpack.c.l.b16 %v54
  %v268 = vunpack.c.h.b16 %v54
  %v269 = vunpack.c.l.b16 %v55
  %v270 = vunpack.c.h.b16 %v55
  %v271 = vunpack.c.l.b16 %v56
  %v272 = vunpack.c.h.b16 %v56
  %v273 = vunpack.c.l.b16 %v57
  %v274 = vunpack.c.h.b16 %v57
  %v275 = vunpack.c.l.b16 %v58
  %v276 = vunpack.c.h.b16 %v58
  %v277 = vunpack.c.l.b16 %v59
  %v278 = vunpack.c.h.b16 %v59
  %v279 = vunpack.c.l.b16 %v60
  %v280 = vunpack.c.h.b16 %v60
  %v281 = vunpack.c.l.b16 %v61
  %v282 = vunpack.c.h.b16 %v61
  %v283 = vunpack.c.l.b16 %v62
  %v284 = vunpack.c.h.b16 %v62
  %v285 = vunpack.c.l.b16 %v63
  %v286 = vunpack.c.h.b16 %v63
  %v287 = vunpack.c.l.b16 %v64
  %v288 = vunpack.c.h.b16 %v64
  %v289 = vunpack.c.l.b16 %v65
  %v290 = vunpack.c.h.b16 %v65
  %v291 = vunpack.c.l.b16 %v66
  %v292 = vunpack.c.h.b16 %v66
  %v293 = vunpack.c.l.b16 %v67
  %v294 = vunpack.c.h.b16 %v67
  %v295 = vpack.c.b16 %v235, %v231
  %v296 = vpack.c.b16 %v236, %v232
  %v297 = vpack.c.b16 %v237, %v233
  %v298 = vpack.c.b16 %v238, %v234
  %v299 = vpack.c.b16 %v243, %v239
  %v300 = vpack.c.b16 %v244, %v240
  %v301 = vpack.c.b16 %v245, %v241
  %v302 = vpack.c.b16 %v246, %v242
  %v303 = vpack.c.b16 %v251, %v247
  %v304 = vpack.c.b16 %v252, %v248
  %v305 = vpack.c.b16 %v253, %v249
  %v306 = vpack.c.b16 %v254, %v250
  %v307 = vpack.c.b16 %v259, %v255
  %v308 = vpack.c.b16 %v260, %v256
  %v309 = vpack.c.b16 %v261, %v257
  %v310 = vpack.c.b16 %v262, %v258
  %v311 = vpack.c.b16 %v267, %v263
  %v312 = vpack.c.b16 %v268, %v264
  %v313 = vpack.c.b16 %v269, %v265
  %v314 = vpack.c.b16 %v270, %v266
  %v315 = vpack.c.b16 %v275, %v271
  %v316 = vpack.c.b16 %v276, %v272
  %v317 = vpack.c.b16 %v277, %v273
  %v318 = vpack.c.b16 %v278, %v274
  %v319 = vpack.c.b16 %v283, %v279
  %v320 = vpack.c.b16 %v284, %v280
  %v321 = vpack.c.b16 %v285, %v281
  %v322 = vpack.c.b16 %v286, %v282
  %v323 = vpack.c.b16 %v291, %v287
  %v324 = vpack.c.b16 %v292, %v288
  %v325 = vpack.c.b16 %v293, %v289
  %v326 = vpack.c.b16 %v294, %v290
  %359 = vmatprep.subr.bf16.mxu0 %v296
  %360 = vmatpush1.bf16.msra.mxu0 %v295
  %361 = vmatprep.subr.bf16.mxu0 %v300
  %362 = vmatpush1.bf16.msra.mxu0 %v299
  %363 = vmatprep.subr.bf16.mxu0 %v304
  %364 = vmatpush1.bf16.msra.mxu0 %v303
  %365 = vmatprep.subr.bf16.mxu0 %v308
  %366 = vmatpush1.bf16.msra.mxu0 %v307
  %367 = vmatprep.subr.bf16.mxu0 %v312
  %368 = vmatpush1.bf16.msra.mxu0 %v311
  %369 = vmatprep.subr.bf16.mxu0 %v316
  %370 = vmatpush1.bf16.msra.mxu0 %v315
  %371 = vmatprep.subr.bf16.mxu0 %v320
  %372 = vmatpush1.bf16.msra.mxu0 %v319
  %373 = vmatprep.subr.bf16.mxu0 %v324
  %374 = vmatpush1.bf16.msra.mxu0 %v323
  %375 = vmatprep.subr.bf16.mxu0 0
  %376 = vmatpush1.bf16.msra.mxu0 0
  %377 = vmatprep.subr.bf16.mxu0 0
  %378 = vmatpush1.bf16.msra.mxu0 0
  %379 = vmatprep.subr.bf16.mxu0 0
  %380 = vmatpush1.bf16.msra.mxu0 0
  %381 = vmatprep.subr.bf16.mxu0 0
  %382 = vmatpush1.bf16.msra.mxu0 0
  %383 = vmatprep.subr.bf16.mxu0 0
  %384 = vmatpush1.bf16.msra.mxu0 0
  %385 = vmatprep.subr.bf16.mxu0 0
  %386 = vmatpush1.bf16.msra.mxu0 0
  %387 = vmatprep.subr.bf16.mxu0 0
  %388 = vmatpush1.bf16.msra.mxu0 0
  %389 = vmatprep.subr.bf16.mxu0 0
  %390 = vmatpush1.bf16.msra.mxu0 0
  %391 = vmatprep.mubr.bf16.mxu0 0
  %392 = vmatmul.mubr.bf16.gmra.mrb[0].mxu0 %v69
  %v393 = vpop.f32.mrb[0].mxu0
  %v394 = vadd.f32 0.0, %v393
  %v395 = vpop.f32.mrb[0].mxu0
  %v396 = vadd.f32 0.0, %v395
  %v397 = vpop.f32.mrb[0].mxu0
  %v398 = vpop.f32.mrb[0].mxu0
  %399 = vdwg.mxu0
  %400 = vmatprep.subr.bf16.mxu0 %v298
  %401 = vmatpush1.bf16.msra.mxu0 %v297
  %402 = vmatprep.subr.bf16.mxu0 %v302
  %403 = vmatpush1.bf16.msra.mxu0 %v301
  %404 = vmatprep.subr.bf16.mxu0 %v306
  %405 = vmatpush1.bf16.msra.mxu0 %v305
  %406 = vmatprep.subr.bf16.mxu0 %v310
  %407 = vmatpush1.bf16.msra.mxu0 %v309
  %408 = vmatprep.subr.bf16.mxu0 %v314
  %409 = vmatpush1.bf16.msra.mxu0 %v313
  %410 = vmatprep.subr.bf16.mxu0 %v318
  %411 = vmatpush1.bf16.msra.mxu0 %v317
  %412 = vmatprep.subr.bf16.mxu0 %v322
  %413 = vmatpush1.bf16.msra.mxu0 %v321
  %414 = vmatprep.subr.bf16.mxu0 %v326
  %415 = vmatpush1.bf16.msra.mxu0 %v325
  %416 = vmatprep.subr.bf16.mxu0 0
  %417 = vmatpush1.bf16.msra.mxu0 0
  %418 = vmatprep.subr.bf16.mxu0 0
  %419 = vmatpush1.bf16.msra.mxu0 0
  %420 = vmatprep.subr.bf16.mxu0 0
  %421 = vmatpush1.bf16.msra.mxu0 0
  %422 = vmatprep.subr.bf16.mxu0 0
  %423 = vmatpush1.bf16.msra.mxu0 0
  %424 = vmatprep.subr.bf16.mxu0 0
  %425 = vmatpush1.bf16.msra.mxu0 0
  %426 = vmatprep.subr.bf16.mxu0 0
  %427 = vmatpush1.bf16.msra.mxu0 0
  %428 = vmatprep.subr.bf16.mxu0 0
  %429 = vmatpush1.bf16.msra.mxu0 0
  %430 = vmatprep.subr.bf16.mxu0 0
  %431 = vmatpush1.bf16.msra.mxu0 0
  %432 = vmatprep.mubr.bf16.mxu0 0
  %433 = vmatmul.mubr.bf16.gmra.mrb[0].mxu0 %v69
  %v434 = vpop.f32.mrb[0].mxu0
  %v435 = vadd.f32 0.0, %v434
  %v436 = vpop.f32.mrb[0].mxu0
  %v437 = vadd.f32 0.0, %v436
  %v438 = vpop.f32.mrb[0].mxu0
  %v439 = vpop.f32.mrb[0].mxu0
  %440 = vdwg.mxu0
  %v441 = vadd.f32 %v152, %v394
  %v442 = vadd.f32 %v154, %v396
  %v443 = vadd.f32 %v193, %v435
  %v444 = vadd.f32 %v195, %v437
  %v445 = vmul.f32 %v441, 0.5
  %v446 = vtanh.pop %v445
  %v447 = vadd.f32 %v446, 1.0
  %v448 = vmul.f32 %v447, 0.5
  %v449 = vmul.f32 %v442, 0.5
  %v450 = vtanh.pop %v449
  %v451 = vadd.f32 %v450, 1.0
  %v452 = vmul.f32 %v451, 0.5
  %v453 = vtanh.pop %v443
  %v454 = vmul.f32 %v444, 0.5
  %v455 = vtanh.pop %v454
  %v456 = vadd.f32 %v455, 1.0
  %v457 = vmul.f32 %v456, 0.5
  %v458 = vmul.f32 %v452, %v70
  %v459 = vmul.f32 %v448, %v453
  %v460 = vadd.f32 %v458, %v459
  %v461 = vtanh.pop %v460
  %v462 = vmul.f32 %v457, %v461
  %v463 = vpack.c.bf16 %v462, %v462
  %s464 = scalar_lea.vmem %s0, 4
  %v465 = vld [vmem:[%s464] sm:$0xf]
  %v467 = vsel %vm113, %v465, 0
  %469 = vmatprep.subr.bf16.mxu0 %v106
  %470 = vmatpush1.bf16.msra.mxu0 %v105
  %471 = vmatprep.subr.bf16.mxu0 0
  %472 = vmatpush1.bf16.msra.mxu0 0
  %473 = vmatprep.subr.bf16.mxu0 0
  %474 = vmatpush1.bf16.msra.mxu0 0
  %475 = vmatprep.subr.bf16.mxu0 0
  %476 = vmatpush1.bf16.msra.mxu0 0
  %477 = vmatprep.subr.bf16.mxu0 0
  %478 = vmatpush1.bf16.msra.mxu0 0
  %479 = vmatprep.subr.bf16.mxu0 0
  %480 = vmatpush1.bf16.msra.mxu0 0
  %481 = vmatprep.subr.bf16.mxu0 0
  %482 = vmatpush1.bf16.msra.mxu0 0
  %483 = vmatprep.subr.bf16.mxu0 0
  %484 = vmatpush1.bf16.msra.mxu0 0
  %485 = vmatprep.subr.bf16.mxu0 0
  %486 = vmatpush1.bf16.msra.mxu0 0
  %487 = vmatprep.subr.bf16.mxu0 0
  %488 = vmatpush1.bf16.msra.mxu0 0
  %489 = vmatprep.subr.bf16.mxu0 0
  %490 = vmatpush1.bf16.msra.mxu0 0
  %491 = vmatprep.subr.bf16.mxu0 0
  %492 = vmatpush1.bf16.msra.mxu0 0
  %493 = vmatprep.subr.bf16.mxu0 0
  %494 = vmatpush1.bf16.msra.mxu0 0
  %495 = vmatprep.subr.bf16.mxu0 0
  %496 = vmatpush1.bf16.msra.mxu0 0
  %497 = vmatprep.subr.bf16.mxu0 0
  %498 = vmatpush1.bf16.msra.mxu0 0
  %499 = vmatprep.subr.bf16.mxu0 0
  %500 = vmatpush1.bf16.msra.mxu0 0
  %501 = vmatprep.mubr.bf16.mxu0 0
  %502 = vmatmul.mubr.bf16.gmra.mrb[0].mxu0 %v467
  %v503 = vpop.f32.mrb[0].mxu0
  %v504 = vadd.f32 %v76, %v503
  %v505 = vpop.f32.mrb[0].mxu0
  %v506 = vadd.f32 %v80, %v505
  %v507 = vpop.f32.mrb[0].mxu0
  %v508 = vpop.f32.mrb[0].mxu0
  %509 = vdwg.mxu0
  %510 = vmatprep.subr.bf16.mxu0 %v108
  %511 = vmatpush1.bf16.msra.mxu0 %v107
  %512 = vmatprep.subr.bf16.mxu0 0
  %513 = vmatpush1.bf16.msra.mxu0 0
  %514 = vmatprep.subr.bf16.mxu0 0
  %515 = vmatpush1.bf16.msra.mxu0 0
  %516 = vmatprep.subr.bf16.mxu0 0
  %517 = vmatpush1.bf16.msra.mxu0 0
  %518 = vmatprep.subr.bf16.mxu0 0
  %519 = vmatpush1.bf16.msra.mxu0 0
  %520 = vmatprep.subr.bf16.mxu0 0
  %521 = vmatpush1.bf16.msra.mxu0 0
  %522 = vmatprep.subr.bf16.mxu0 0
  %523 = vmatpush1.bf16.msra.mxu0 0
  %524 = vmatprep.subr.bf16.mxu0 0
  %525 = vmatpush1.bf16.msra.mxu0 0
  %526 = vmatprep.subr.bf16.mxu0 0
  %527 = vmatpush1.bf16.msra.mxu0 0
  %528 = vmatprep.subr.bf16.mxu0 0
  %529 = vmatpush1.bf16.msra.mxu0 0
  %530 = vmatprep.subr.bf16.mxu0 0
  %531 = vmatpush1.bf16.msra.mxu0 0
  %532 = vmatprep.subr.bf16.mxu0 0
  %533 = vmatpush1.bf16.msra.mxu0 0
  %534 = vmatprep.subr.bf16.mxu0 0
  %535 = vmatpush1.bf16.msra.mxu0 0
  %536 = vmatprep.subr.bf16.mxu0 0
  %537 = vmatpush1.bf16.msra.mxu0 0
  %538 = vmatprep.subr.bf16.mxu0 0
  %539 = vmatpush1.bf16.msra.mxu0 0
  %540 = vmatprep.subr.bf16.mxu0 0
  %541 = vmatpush1.bf16.msra.mxu0 0
  %542 = vmatprep.mubr.bf16.mxu0 0
  %543 = vmatmul.mubr.bf16.gmra.mrb[0].mxu0 %v467
  %v544 = vpop.f32.mrb[0].mxu0
  %v545 = vadd.f32 %v84, %v544
  %v546 = vpop.f32.mrb[0].mxu0
  %v547 = vadd.f32 %v88, %v546
  %v548 = vpop.f32.mrb[0].mxu0
  %v549 = vpop.f32.mrb[0].mxu0
  %550 = vdwg.mxu0
  %551 = vmatprep.subr.bf16.mxu0 %v296
  %552 = vmatpush1.bf16.msra.mxu0 %v295
  %553 = vmatprep.subr.bf16.mxu0 %v300
  %554 = vmatpush1.bf16.msra.mxu0 %v299
  %555 = vmatprep.subr.bf16.mxu0 %v304
  %556 = vmatpush1.bf16.msra.mxu0 %v303
  %557 = vmatprep.subr.bf16.mxu0 %v308
  %558 = vmatpush1.bf16.msra.mxu0 %v307
  %559 = vmatprep.subr.bf16.mxu0 %v312
  %560 = vmatpush1.bf16.msra.mxu0 %v311
  %561 = vmatprep.subr.bf16.mxu0 %v316
  %562 = vmatpush1.bf16.msra.mxu0 %v315
  %563 = vmatprep.subr.bf16.mxu0 %v320
  %564 = vmatpush1.bf16.msra.mxu0 %v319
  %565 = vmatprep.subr.bf16.mxu0 %v324
  %566 = vmatpush1.bf16.msra.mxu0 %v323
  %567 = vmatprep.subr.bf16.mxu0 0
  %568 = vmatpush1.bf16.msra.mxu0 0
  %569 = vmatprep.subr.bf16.mxu0 0
  %570 = vmatpush1.bf16.msra.mxu0 0
  %571 = vmatprep.subr.bf16.mxu0 0
  %572 = vmatpush1.bf16.msra.mxu0 0
  %573 = vmatprep.subr.bf16.mxu0 0
  %574 = vmatpush1.bf16.msra.mxu0 0
  %575 = vmatprep.subr.bf16.mxu0 0
  %576 = vmatpush1.bf16.msra.mxu0 0
  %577 = vmatprep.subr.bf16.mxu0 0
  %578 = vmatpush1.bf16.msra.mxu0 0
  %579 = vmatprep.subr.bf16.mxu0 0
  %580 = vmatpush1.bf16.msra.mxu0 0
  %581 = vmatprep.subr.bf16.mxu0 0
  %582 = vmatpush1.bf16.msra.mxu0 0
  %583 = vmatprep.mubr.bf16.mxu0 0
  %584 = vmatmul.mubr.bf16.gmra.mrb[0].mxu0 %v463
  %v585 = vpop.f32.mrb[0].mxu0
  %v586 = vadd.f32 0.0, %v585
  %v587 = vpop.f32.mrb[0].mxu0
  %v588 = vadd.f32 0.0, %v587
  %v589 = vpop.f32.mrb[0].mxu0
  %v590 = vpop.f32.mrb[0].mxu0
  %591 = vdwg.mxu0
  %592 = vmatprep.subr.bf16.mxu0 %v298
  %593 = vmatpush1.bf16.msra.mxu0 %v297
  %594 = vmatprep.subr.bf16.mxu0 %v302
  %595 = vmatpush1.bf16.msra.mxu0 %v301
  %596 = vmatprep.subr.bf16.mxu0 %v306
  %597 = vmatpush1.bf16.msra.mxu0 %v305
  %598 = vmatprep.subr.bf16.mxu0 %v310
  %599 = vmatpush1.bf16.msra.mxu0 %v309
  %600 = vmatprep.subr.bf16.mxu0 %v314
  %601 = vmatpush1.bf16.msra.mxu0 %v313
  %602 = vmatprep.subr.bf16.mxu0 %v318
  %603 = vmatpush1.bf16.msra.mxu0 %v317
  %604 = vmatprep.subr.bf16.mxu0 %v322
  %605 = vmatpush1.bf16.msra.mxu0 %v321
  %606 = vmatprep.subr.bf16.mxu0 %v326
  %607 = vmatpush1.bf16.msra.mxu0 %v325
  %608 = vmatprep.subr.bf16.mxu0 0
  %609 = vmatpush1.bf16.msra.mxu0 0
  %610 = vmatprep.subr.bf16.mxu0 0
  %611 = vmatpush1.bf16.msra.mxu0 0
  %612 = vmatprep.subr.bf16.mxu0 0
  %613 = vmatpush1.bf16.msra.mxu0 0
  %614 = vmatprep.subr.bf16.mxu0 0
  %615 = vmatpush1.bf16.msra.mxu0 0
  %616 = vmatprep.subr.bf16.mxu0 0
  %617 = vmatpush1.bf16.msra.mxu0 0
  %618 = vmatprep.subr.bf16.mxu0 0
  %619 = vmatpush1.bf16.msra.mxu0 0
  %620 = vmatprep.subr.bf16.mxu0 0
  %621 = vmatpush1.bf16.msra.mxu0 0
  %622 = vmatprep.subr.bf16.mxu0 0
  %623 = vmatpush1.bf16.msra.mxu0 0
  %624 = vmatprep.mubr.bf16.mxu0 0
  %625 = vmatmul.mubr.bf16.gmra.mrb[0].mxu0 %v463
  %v626 = vpop.f32.mrb[0].mxu0
  %v627 = vadd.f32 0.0, %v626
  %v628 = vpop.f32.mrb[0].mxu0
  %v629 = vadd.f32 0.0, %v628
  %v630 = vpop.f32.mrb[0].mxu0
  %v631 = vpop.f32.mrb[0].mxu0
  %632 = vdwg.mxu0
  %v633 = vadd.f32 %v504, %v586
  %v634 = vadd.f32 %v506, %v588
  %v635 = vadd.f32 %v545, %v627
  %v636 = vadd.f32 %v547, %v629
  %v637 = vmul.f32 %v633, 0.5
  %v638 = vtanh.pop %v637
  %v639 = vadd.f32 %v638, 1.0
  %v640 = vmul.f32 %v639, 0.5
  %v641 = vmul.f32 %v634, 0.5
  %v642 = vtanh.pop %v641
  %v643 = vadd.f32 %v642, 1.0
  %v644 = vmul.f32 %v643, 0.5
  %v645 = vtanh.pop %v635
  %v646 = vmul.f32 %v636, 0.5
  %v647 = vtanh.pop %v646
  %v648 = vadd.f32 %v647, 1.0
  %v649 = vmul.f32 %v648, 0.5
  %v650 = vmul.f32 %v644, %v460
  %v651 = vmul.f32 %v640, %v645
  %v652 = vadd.f32 %v650, %v651
  %v653 = vtanh.pop %v652
  %v654 = vmul.f32 %v649, %v653
  %v655 = vpack.c.bf16 %v654, %v654
  %s656 = scalar_lea.vmem %s0, 8
  %v657 = vld [vmem:[%s656] sm:$0xf]
  %v659 = vsel %vm113, %v657, 0
  %661 = vmatprep.subr.bf16.mxu0 %v106
  %662 = vmatpush1.bf16.msra.mxu0 %v105
  %663 = vmatprep.subr.bf16.mxu0 0
  %664 = vmatpush1.bf16.msra.mxu0 0
  %665 = vmatprep.subr.bf16.mxu0 0
  %666 = vmatpush1.bf16.msra.mxu0 0
  %667 = vmatprep.subr.bf16.mxu0 0
  %668 = vmatpush1.bf16.msra.mxu0 0
  %669 = vmatprep.subr.bf16.mxu0 0
  %670 = vmatpush1.bf16.msra.mxu0 0
  %671 = vmatprep.subr.bf16.mxu0 0
  %672 = vmatpush1.bf16.msra.mxu0 0
  %673 = vmatprep.subr.bf16.mxu0 0
  %674 = vmatpush1.bf16.msra.mxu0 0
  %675 = vmatprep.subr.bf16.mxu0 0
  %676 = vmatpush1.bf16.msra.mxu0 0
  %677 = vmatprep.subr.bf16.mxu0 0
  %678 = vmatpush1.bf16.msra.mxu0 0
  %679 = vmatprep.subr.bf16.mxu0 0
  %680 = vmatpush1.bf16.msra.mxu0 0
  %681 = vmatprep.subr.bf16.mxu0 0
  %682 = vmatpush1.bf16.msra.mxu0 0
  %683 = vmatprep.subr.bf16.mxu0 0
  %684 = vmatpush1.bf16.msra.mxu0 0
  %685 = vmatprep.subr.bf16.mxu0 0
  %686 = vmatpush1.bf16.msra.mxu0 0
  %687 = vmatprep.subr.bf16.mxu0 0
  %688 = vmatpush1.bf16.msra.mxu0 0
  %689 = vmatprep.subr.bf16.mxu0 0
  %690 = vmatpush1.bf16.msra.mxu0 0
  %691 = vmatprep.subr.bf16.mxu0 0
  %692 = vmatpush1.bf16.msra.mxu0 0
  %693 = vmatprep.mubr.bf16.mxu0 0
  %694 = vmatmul.mubr.bf16.gmra.mrb[0].mxu0 %v659
  %v695 = vpop.f32.mrb[0].mxu0
  %v696 = vadd.f32 %v76, %v695
  %v697 = vpop.f32.mrb[0].mxu0
  %v698 = vadd.f32 %v80, %v697
  %v699 = vpop.f32.mrb[0].mxu0
  %v700 = vpop.f32.mrb[0].mxu0
  %701 = vdwg.mxu0
  %702 = vmatprep.subr.bf16.mxu0 %v108
  %703 = vmatpush1.bf16.msra.mxu0 %v107
  %704 = vmatprep.subr.bf16.mxu0 0
  %705 = vmatpush1.bf16.msra.mxu0 0
  %706 = vmatprep.subr.bf16.mxu0 0
  %707 = vmatpush1.bf16.msra.mxu0 0
  %708 = vmatprep.subr.bf16.mxu0 0
  %709 = vmatpush1.bf16.msra.mxu0 0
  %710 = vmatprep.subr.bf16.mxu0 0
  %711 = vmatpush1.bf16.msra.mxu0 0
  %712 = vmatprep.subr.bf16.mxu0 0
  %713 = vmatpush1.bf16.msra.mxu0 0
  %714 = vmatprep.subr.bf16.mxu0 0
  %715 = vmatpush1.bf16.msra.mxu0 0
  %716 = vmatprep.subr.bf16.mxu0 0
  %717 = vmatpush1.bf16.msra.mxu0 0
  %718 = vmatprep.subr.bf16.mxu0 0
  %719 = vmatpush1.bf16.msra.mxu0 0
  %720 = vmatprep.subr.bf16.mxu0 0
  %721 = vmatpush1.bf16.msra.mxu0 0
  %722 = vmatprep.subr.bf16.mxu0 0
  %723 = vmatpush1.bf16.msra.mxu0 0
  %724 = vmatprep.subr.bf16.mxu0 0
  %725 = vmatpush1.bf16.msra.mxu0 0
  %726 = vmatprep.subr.bf16.mxu0 0
  %727 = vmatpush1.bf16.msra.mxu0 0
  %728 = vmatprep.subr.bf16.mxu0 0
  %729 = vmatpush1.bf16.msra.mxu0 0
  %730 = vmatprep.subr.bf16.mxu0 0
  %731 = vmatpush1.bf16.msra.mxu0 0
  %732 = vmatprep.subr.bf16.mxu0 0
  %733 = vmatpush1.bf16.msra.mxu0 0
  %734 = vmatprep.mubr.bf16.mxu0 0
  %735 = vmatmul.mubr.bf16.gmra.mrb[0].mxu0 %v659
  %v736 = vpop.f32.mrb[0].mxu0
  %v737 = vadd.f32 %v84, %v736
  %v738 = vpop.f32.mrb[0].mxu0
  %v739 = vadd.f32 %v88, %v738
  %v740 = vpop.f32.mrb[0].mxu0
  %v741 = vpop.f32.mrb[0].mxu0
  %742 = vdwg.mxu0
  %743 = vmatprep.subr.bf16.mxu0 %v296
  %744 = vmatpush1.bf16.msra.mxu0 %v295
  %745 = vmatprep.subr.bf16.mxu0 %v300
  %746 = vmatpush1.bf16.msra.mxu0 %v299
  %747 = vmatprep.subr.bf16.mxu0 %v304
  %748 = vmatpush1.bf16.msra.mxu0 %v303
  %749 = vmatprep.subr.bf16.mxu0 %v308
  %750 = vmatpush1.bf16.msra.mxu0 %v307
  %751 = vmatprep.subr.bf16.mxu0 %v312
  %752 = vmatpush1.bf16.msra.mxu0 %v311
  %753 = vmatprep.subr.bf16.mxu0 %v316
  %754 = vmatpush1.bf16.msra.mxu0 %v315
  %755 = vmatprep.subr.bf16.mxu0 %v320
  %756 = vmatpush1.bf16.msra.mxu0 %v319
  %757 = vmatprep.subr.bf16.mxu0 %v324
  %758 = vmatpush1.bf16.msra.mxu0 %v323
  %759 = vmatprep.subr.bf16.mxu0 0
  %760 = vmatpush1.bf16.msra.mxu0 0
  %761 = vmatprep.subr.bf16.mxu0 0
  %762 = vmatpush1.bf16.msra.mxu0 0
  %763 = vmatprep.subr.bf16.mxu0 0
  %764 = vmatpush1.bf16.msra.mxu0 0
  %765 = vmatprep.subr.bf16.mxu0 0
  %766 = vmatpush1.bf16.msra.mxu0 0
  %767 = vmatprep.subr.bf16.mxu0 0
  %768 = vmatpush1.bf16.msra.mxu0 0
  %769 = vmatprep.subr.bf16.mxu0 0
  %770 = vmatpush1.bf16.msra.mxu0 0
  %771 = vmatprep.subr.bf16.mxu0 0
  %772 = vmatpush1.bf16.msra.mxu0 0
  %773 = vmatprep.subr.bf16.mxu0 0
  %774 = vmatpush1.bf16.msra.mxu0 0
  %775 = vmatprep.mubr.bf16.mxu0 0
  %776 = vmatmul.mubr.bf16.gmra.mrb[0].mxu0 %v655
  %v777 = vpop.f32.mrb[0].mxu0
  %v778 = vadd.f32 0.0, %v777
  %v779 = vpop.f32.mrb[0].mxu0
  %v780 = vadd.f32 0.0, %v779
  %v781 = vpop.f32.mrb[0].mxu0
  %v782 = vpop.f32.mrb[0].mxu0
  %783 = vdwg.mxu0
  %784 = vmatprep.subr.bf16.mxu0 %v298
  %785 = vmatpush1.bf16.msra.mxu0 %v297
  %786 = vmatprep.subr.bf16.mxu0 %v302
  %787 = vmatpush1.bf16.msra.mxu0 %v301
  %788 = vmatprep.subr.bf16.mxu0 %v306
  %789 = vmatpush1.bf16.msra.mxu0 %v305
  %790 = vmatprep.subr.bf16.mxu0 %v310
  %791 = vmatpush1.bf16.msra.mxu0 %v309
  %792 = vmatprep.subr.bf16.mxu0 %v314
  %793 = vmatpush1.bf16.msra.mxu0 %v313
  %794 = vmatprep.subr.bf16.mxu0 %v318
  %795 = vmatpush1.bf16.msra.mxu0 %v317
  %796 = vmatprep.subr.bf16.mxu0 %v322
  %797 = vmatpush1.bf16.msra.mxu0 %v321
  %798 = vmatprep.subr.bf16.mxu0 %v326
  %799 = vmatpush1.bf16.msra.mxu0 %v325
  %800 = vmatprep.subr.bf16.mxu0 0
  %801 = vmatpush1.bf16.msra.mxu0 0
  %802 = vmatprep.subr.bf16.mxu0 0
  %803 = vmatpush1.bf16.msra.mxu0 0
  %804 = vmatprep.subr.bf16.mxu0 0
  %805 = vmatpush1.bf16.msra.mxu0 0
  %806 = vmatprep.subr.bf16.mxu0 0
  %807 = vmatpush1.bf16.msra.mxu0 0
  %808 = vmatprep.subr.bf16.mxu0 0
  %809 = vmatpush1.bf16.msra.mxu0 0
  %810 = vmatprep.subr.bf16.mxu0 0
  %811 = vmatpush1.bf16.msra.mxu0 0
  %812 = vmatprep.subr.bf16.mxu0 0
  %813 = vmatpush1.bf16.msra.mxu0 0
  %814 = vmatprep.subr.bf16.mxu0 0
  %815 = vmatpush1.bf16.msra.mxu0 0
  %816 = vmatprep.mubr.bf16.mxu0 0
  %817 = vmatmul.mubr.bf16.gmra.mrb[0].mxu0 %v655
  %v818 = vpop.f32.mrb[0].mxu0
  %v819 = vadd.f32 0.0, %v818
  %v820 = vpop.f32.mrb[0].mxu0
  %v821 = vadd.f32 0.0, %v820
  %v822 = vpop.f32.mrb[0].mxu0
  %v823 = vpop.f32.mrb[0].mxu0
  %824 = vdwg.mxu0
  %v825 = vadd.f32 %v696, %v778
  %v826 = vadd.f32 %v698, %v780
  %v827 = vadd.f32 %v737, %v819
  %v828 = vadd.f32 %v739, %v821
  %v829 = vmul.f32 %v825, 0.5
  %v830 = vtanh.pop %v829
  %v831 = vadd.f32 %v830, 1.0
  %v832 = vmul.f32 %v831, 0.5
  %v833 = vmul.f32 %v826, 0.5
  %v834 = vtanh.pop %v833
  %v835 = vadd.f32 %v834, 1.0
  %v836 = vmul.f32 %v835, 0.5
  %v837 = vtanh.pop %v827
  %v838 = vmul.f32 %v828, 0.5
  %v839 = vtanh.pop %v838
  %v840 = vadd.f32 %v839, 1.0
  %v841 = vmul.f32 %v840, 0.5
  %v842 = vmul.f32 %v836, %v652
  %v843 = vmul.f32 %v832, %v837
  %v844 = vadd.f32 %v842, %v843
  %v845 = vtanh.pop %v844
  %v846 = vmul.f32 %v841, %v845
  %v847 = vpack.c.bf16 %v846, %v846
  %s848 = scalar_lea.vmem %s0, 12
  %v849 = vld [vmem:[%s848] sm:$0xf]
  %v851 = vsel %vm113, %v849, 0
  %853 = vmatprep.subr.bf16.mxu0 %v106
  %854 = vmatpush1.bf16.msra.mxu0 %v105
  %855 = vmatprep.subr.bf16.mxu0 0
  %856 = vmatpush1.bf16.msra.mxu0 0
  %857 = vmatprep.subr.bf16.mxu0 0
  %858 = vmatpush1.bf16.msra.mxu0 0
  %859 = vmatprep.subr.bf16.mxu0 0
  %860 = vmatpush1.bf16.msra.mxu0 0
  %861 = vmatprep.subr.bf16.mxu0 0
  %862 = vmatpush1.bf16.msra.mxu0 0
  %863 = vmatprep.subr.bf16.mxu0 0
  %864 = vmatpush1.bf16.msra.mxu0 0
  %865 = vmatprep.subr.bf16.mxu0 0
  %866 = vmatpush1.bf16.msra.mxu0 0
  %867 = vmatprep.subr.bf16.mxu0 0
  %868 = vmatpush1.bf16.msra.mxu0 0
  %869 = vmatprep.subr.bf16.mxu0 0
  %870 = vmatpush1.bf16.msra.mxu0 0
  %871 = vmatprep.subr.bf16.mxu0 0
  %872 = vmatpush1.bf16.msra.mxu0 0
  %873 = vmatprep.subr.bf16.mxu0 0
  %874 = vmatpush1.bf16.msra.mxu0 0
  %875 = vmatprep.subr.bf16.mxu0 0
  %876 = vmatpush1.bf16.msra.mxu0 0
  %877 = vmatprep.subr.bf16.mxu0 0
  %878 = vmatpush1.bf16.msra.mxu0 0
  %879 = vmatprep.subr.bf16.mxu0 0
  %880 = vmatpush1.bf16.msra.mxu0 0
  %881 = vmatprep.subr.bf16.mxu0 0
  %882 = vmatpush1.bf16.msra.mxu0 0
  %883 = vmatprep.subr.bf16.mxu0 0
  %884 = vmatpush1.bf16.msra.mxu0 0
  %885 = vmatprep.mubr.bf16.mxu0 0
  %886 = vmatmul.mubr.bf16.gmra.mrb[0].mxu0 %v851
  %v887 = vpop.f32.mrb[0].mxu0
  %v888 = vadd.f32 %v76, %v887
  %v889 = vpop.f32.mrb[0].mxu0
  %v890 = vadd.f32 %v80, %v889
  %v891 = vpop.f32.mrb[0].mxu0
  %v892 = vpop.f32.mrb[0].mxu0
  %893 = vdwg.mxu0
  %894 = vmatprep.subr.bf16.mxu0 %v108
  %895 = vmatpush1.bf16.msra.mxu0 %v107
  %896 = vmatprep.subr.bf16.mxu0 0
  %897 = vmatpush1.bf16.msra.mxu0 0
  %898 = vmatprep.subr.bf16.mxu0 0
  %899 = vmatpush1.bf16.msra.mxu0 0
  %900 = vmatprep.subr.bf16.mxu0 0
  %901 = vmatpush1.bf16.msra.mxu0 0
  %902 = vmatprep.subr.bf16.mxu0 0
  %903 = vmatpush1.bf16.msra.mxu0 0
  %904 = vmatprep.subr.bf16.mxu0 0
  %905 = vmatpush1.bf16.msra.mxu0 0
  %906 = vmatprep.subr.bf16.mxu0 0
  %907 = vmatpush1.bf16.msra.mxu0 0
  %908 = vmatprep.subr.bf16.mxu0 0
  %909 = vmatpush1.bf16.msra.mxu0 0
  %910 = vmatprep.subr.bf16.mxu0 0
  %911 = vmatpush1.bf16.msra.mxu0 0
  %912 = vmatprep.subr.bf16.mxu0 0
  %913 = vmatpush1.bf16.msra.mxu0 0
  %914 = vmatprep.subr.bf16.mxu0 0
  %915 = vmatpush1.bf16.msra.mxu0 0
  %916 = vmatprep.subr.bf16.mxu0 0
  %917 = vmatpush1.bf16.msra.mxu0 0
  %918 = vmatprep.subr.bf16.mxu0 0
  %919 = vmatpush1.bf16.msra.mxu0 0
  %920 = vmatprep.subr.bf16.mxu0 0
  %921 = vmatpush1.bf16.msra.mxu0 0
  %922 = vmatprep.subr.bf16.mxu0 0
  %923 = vmatpush1.bf16.msra.mxu0 0
  %924 = vmatprep.subr.bf16.mxu0 0
  %925 = vmatpush1.bf16.msra.mxu0 0
  %926 = vmatprep.mubr.bf16.mxu0 0
  %927 = vmatmul.mubr.bf16.gmra.mrb[0].mxu0 %v851
  %v928 = vpop.f32.mrb[0].mxu0
  %v929 = vadd.f32 %v84, %v928
  %v930 = vpop.f32.mrb[0].mxu0
  %v931 = vadd.f32 %v88, %v930
  %v932 = vpop.f32.mrb[0].mxu0
  %v933 = vpop.f32.mrb[0].mxu0
  %934 = vdwg.mxu0
  %935 = vmatprep.subr.bf16.mxu0 %v296
  %936 = vmatpush1.bf16.msra.mxu0 %v295
  %937 = vmatprep.subr.bf16.mxu0 %v300
  %938 = vmatpush1.bf16.msra.mxu0 %v299
  %939 = vmatprep.subr.bf16.mxu0 %v304
  %940 = vmatpush1.bf16.msra.mxu0 %v303
  %941 = vmatprep.subr.bf16.mxu0 %v308
  %942 = vmatpush1.bf16.msra.mxu0 %v307
  %943 = vmatprep.subr.bf16.mxu0 %v312
  %944 = vmatpush1.bf16.msra.mxu0 %v311
  %945 = vmatprep.subr.bf16.mxu0 %v316
  %946 = vmatpush1.bf16.msra.mxu0 %v315
  %947 = vmatprep.subr.bf16.mxu0 %v320
  %948 = vmatpush1.bf16.msra.mxu0 %v319
  %949 = vmatprep.subr.bf16.mxu0 %v324
  %950 = vmatpush1.bf16.msra.mxu0 %v323
  %951 = vmatprep.subr.bf16.mxu0 0
  %952 = vmatpush1.bf16.msra.mxu0 0
  %953 = vmatprep.subr.bf16.mxu0 0
  %954 = vmatpush1.bf16.msra.mxu0 0
  %955 = vmatprep.subr.bf16.mxu0 0
  %956 = vmatpush1.bf16.msra.mxu0 0
  %957 = vmatprep.subr.bf16.mxu0 0
  %958 = vmatpush1.bf16.msra.mxu0 0
  %959 = vmatprep.subr.bf16.mxu0 0
  %960 = vmatpush1.bf16.msra.mxu0 0
  %961 = vmatprep.subr.bf16.mxu0 0
  %962 = vmatpush1.bf16.msra.mxu0 0
  %963 = vmatprep.subr.bf16.mxu0 0
  %964 = vmatpush1.bf16.msra.mxu0 0
  %965 = vmatprep.subr.bf16.mxu0 0
  %966 = vmatpush1.bf16.msra.mxu0 0
  %967 = vmatprep.mubr.bf16.mxu0 0
  %968 = vmatmul.mubr.bf16.gmra.mrb[0].mxu0 %v847
  %v969 = vpop.f32.mrb[0].mxu0
  %v970 = vadd.f32 0.0, %v969
  %v971 = vpop.f32.mrb[0].mxu0
  %v972 = vadd.f32 0.0, %v971
  %v973 = vpop.f32.mrb[0].mxu0
  %v974 = vpop.f32.mrb[0].mxu0
  %975 = vdwg.mxu0
  %976 = vmatprep.subr.bf16.mxu0 %v298
  %977 = vmatpush1.bf16.msra.mxu0 %v297
  %978 = vmatprep.subr.bf16.mxu0 %v302
  %979 = vmatpush1.bf16.msra.mxu0 %v301
  %980 = vmatprep.subr.bf16.mxu0 %v306
  %981 = vmatpush1.bf16.msra.mxu0 %v305
  %982 = vmatprep.subr.bf16.mxu0 %v310
  %983 = vmatpush1.bf16.msra.mxu0 %v309
  %984 = vmatprep.subr.bf16.mxu0 %v314
  %985 = vmatpush1.bf16.msra.mxu0 %v313
  %986 = vmatprep.subr.bf16.mxu0 %v318
  %987 = vmatpush1.bf16.msra.mxu0 %v317
  %988 = vmatprep.subr.bf16.mxu0 %v322
  %989 = vmatpush1.bf16.msra.mxu0 %v321
  %990 = vmatprep.subr.bf16.mxu0 %v326
  %991 = vmatpush1.bf16.msra.mxu0 %v325
  %992 = vmatprep.subr.bf16.mxu0 0
  %993 = vmatpush1.bf16.msra.mxu0 0
  %994 = vmatprep.subr.bf16.mxu0 0
  %995 = vmatpush1.bf16.msra.mxu0 0
  %996 = vmatprep.subr.bf16.mxu0 0
  %997 = vmatpush1.bf16.msra.mxu0 0
  %998 = vmatprep.subr.bf16.mxu0 0
  %999 = vmatpush1.bf16.msra.mxu0 0
  %1000 = vmatprep.subr.bf16.mxu0 0
  %1001 = vmatpush1.bf16.msra.mxu0 0
  %1002 = vmatprep.subr.bf16.mxu0 0
  %1003 = vmatpush1.bf16.msra.mxu0 0
  %1004 = vmatprep.subr.bf16.mxu0 0
  %1005 = vmatpush1.bf16.msra.mxu0 0
  %1006 = vmatprep.subr.bf16.mxu0 0
  %1007 = vmatpush1.bf16.msra.mxu0 0
  %1008 = vmatprep.mubr.bf16.mxu0 0
  %1009 = vmatmul.mubr.bf16.gmra.mrb[0].mxu0 %v847
  %v1010 = vpop.f32.mrb[0].mxu0
  %v1011 = vadd.f32 0.0, %v1010
  %v1012 = vpop.f32.mrb[0].mxu0
  %v1013 = vadd.f32 0.0, %v1012
  %v1014 = vpop.f32.mrb[0].mxu0
  %v1015 = vpop.f32.mrb[0].mxu0
  %1016 = vdwg.mxu0
  %v1017 = vadd.f32 %v888, %v970
  %v1018 = vadd.f32 %v890, %v972
  %v1019 = vadd.f32 %v929, %v1011
  %v1020 = vadd.f32 %v931, %v1013
  %v1021 = vmul.f32 %v1017, 0.5
  %v1022 = vtanh.pop %v1021
  %v1023 = vadd.f32 %v1022, 1.0
  %v1024 = vmul.f32 %v1023, 0.5
  %v1025 = vmul.f32 %v1018, 0.5
  %v1026 = vtanh.pop %v1025
  %v1027 = vadd.f32 %v1026, 1.0
  %v1028 = vmul.f32 %v1027, 0.5
  %v1029 = vtanh.pop %v1019
  %v1030 = vmul.f32 %v1020, 0.5
  %v1031 = vtanh.pop %v1030
  %v1032 = vadd.f32 %v1031, 1.0
  %v1033 = vmul.f32 %v1032, 0.5
  %v1034 = vmul.f32 %v1028, %v844
  %v1035 = vmul.f32 %v1024, %v1029
  %v1036 = vadd.f32 %v1034, %v1035
  %v1037 = vtanh.pop %v1036
  %v1038 = vmul.f32 %v1033, %v1037
  %v1039 = vpack.c.bf16 %v1038, %v1038
  %s1040 = scalar_lea.vmem %s0, 16
  %v1041 = vld [vmem:[%s1040] sm:$0xf]
  %v1043 = vsel %vm113, %v1041, 0
  %1045 = vmatprep.subr.bf16.mxu0 %v106
  %1046 = vmatpush1.bf16.msra.mxu0 %v105
  %1047 = vmatprep.subr.bf16.mxu0 0
  %1048 = vmatpush1.bf16.msra.mxu0 0
  %1049 = vmatprep.subr.bf16.mxu0 0
  %1050 = vmatpush1.bf16.msra.mxu0 0
  %1051 = vmatprep.subr.bf16.mxu0 0
  %1052 = vmatpush1.bf16.msra.mxu0 0
  %1053 = vmatprep.subr.bf16.mxu0 0
  %1054 = vmatpush1.bf16.msra.mxu0 0
  %1055 = vmatprep.subr.bf16.mxu0 0
  %1056 = vmatpush1.bf16.msra.mxu0 0
  %1057 = vmatprep.subr.bf16.mxu0 0
  %1058 = vmatpush1.bf16.msra.mxu0 0
  %1059 = vmatprep.subr.bf16.mxu0 0
  %1060 = vmatpush1.bf16.msra.mxu0 0
  %1061 = vmatprep.subr.bf16.mxu0 0
  %1062 = vmatpush1.bf16.msra.mxu0 0
  %1063 = vmatprep.subr.bf16.mxu0 0
  %1064 = vmatpush1.bf16.msra.mxu0 0
  %1065 = vmatprep.subr.bf16.mxu0 0
  %1066 = vmatpush1.bf16.msra.mxu0 0
  %1067 = vmatprep.subr.bf16.mxu0 0
  %1068 = vmatpush1.bf16.msra.mxu0 0
  %1069 = vmatprep.subr.bf16.mxu0 0
  %1070 = vmatpush1.bf16.msra.mxu0 0
  %1071 = vmatprep.subr.bf16.mxu0 0
  %1072 = vmatpush1.bf16.msra.mxu0 0
  %1073 = vmatprep.subr.bf16.mxu0 0
  %1074 = vmatpush1.bf16.msra.mxu0 0
  %1075 = vmatprep.subr.bf16.mxu0 0
  %1076 = vmatpush1.bf16.msra.mxu0 0
  %1077 = vmatprep.mubr.bf16.mxu0 0
  %1078 = vmatmul.mubr.bf16.gmra.mrb[0].mxu0 %v1043
  %v1079 = vpop.f32.mrb[0].mxu0
  %v1080 = vadd.f32 %v76, %v1079
  %v1081 = vpop.f32.mrb[0].mxu0
  %v1082 = vadd.f32 %v80, %v1081
  %v1083 = vpop.f32.mrb[0].mxu0
  %v1084 = vpop.f32.mrb[0].mxu0
  %1085 = vdwg.mxu0
  %1086 = vmatprep.subr.bf16.mxu0 %v108
  %1087 = vmatpush1.bf16.msra.mxu0 %v107
  %1088 = vmatprep.subr.bf16.mxu0 0
  %1089 = vmatpush1.bf16.msra.mxu0 0
  %1090 = vmatprep.subr.bf16.mxu0 0
  %1091 = vmatpush1.bf16.msra.mxu0 0
  %1092 = vmatprep.subr.bf16.mxu0 0
  %1093 = vmatpush1.bf16.msra.mxu0 0
  %1094 = vmatprep.subr.bf16.mxu0 0
  %1095 = vmatpush1.bf16.msra.mxu0 0
  %1096 = vmatprep.subr.bf16.mxu0 0
  %1097 = vmatpush1.bf16.msra.mxu0 0
  %1098 = vmatprep.subr.bf16.mxu0 0
  %1099 = vmatpush1.bf16.msra.mxu0 0
  %1100 = vmatprep.subr.bf16.mxu0 0
  %1101 = vmatpush1.bf16.msra.mxu0 0
  %1102 = vmatprep.subr.bf16.mxu0 0
  %1103 = vmatpush1.bf16.msra.mxu0 0
  %1104 = vmatprep.subr.bf16.mxu0 0
  %1105 = vmatpush1.bf16.msra.mxu0 0
  %1106 = vmatprep.subr.bf16.mxu0 0
  %1107 = vmatpush1.bf16.msra.mxu0 0
  %1108 = vmatprep.subr.bf16.mxu0 0
  %1109 = vmatpush1.bf16.msra.mxu0 0
  %1110 = vmatprep.subr.bf16.mxu0 0
  %1111 = vmatpush1.bf16.msra.mxu0 0
  %1112 = vmatprep.subr.bf16.mxu0 0
  %1113 = vmatpush1.bf16.msra.mxu0 0
  %1114 = vmatprep.subr.bf16.mxu0 0
  %1115 = vmatpush1.bf16.msra.mxu0 0
  %1116 = vmatprep.subr.bf16.mxu0 0
  %1117 = vmatpush1.bf16.msra.mxu0 0
  %1118 = vmatprep.mubr.bf16.mxu0 0
  %1119 = vmatmul.mubr.bf16.gmra.mrb[0].mxu0 %v1043
  %v1120 = vpop.f32.mrb[0].mxu0
  %v1121 = vadd.f32 %v84, %v1120
  %v1122 = vpop.f32.mrb[0].mxu0
  %v1123 = vadd.f32 %v88, %v1122
  %v1124 = vpop.f32.mrb[0].mxu0
  %v1125 = vpop.f32.mrb[0].mxu0
  %1126 = vdwg.mxu0
  %1127 = vmatprep.subr.bf16.mxu0 %v296
  %1128 = vmatpush1.bf16.msra.mxu0 %v295
  %1129 = vmatprep.subr.bf16.mxu0 %v300
  %1130 = vmatpush1.bf16.msra.mxu0 %v299
  %1131 = vmatprep.subr.bf16.mxu0 %v304
  %1132 = vmatpush1.bf16.msra.mxu0 %v303
  %1133 = vmatprep.subr.bf16.mxu0 %v308
  %1134 = vmatpush1.bf16.msra.mxu0 %v307
  %1135 = vmatprep.subr.bf16.mxu0 %v312
  %1136 = vmatpush1.bf16.msra.mxu0 %v311
  %1137 = vmatprep.subr.bf16.mxu0 %v316
  %1138 = vmatpush1.bf16.msra.mxu0 %v315
  %1139 = vmatprep.subr.bf16.mxu0 %v320
  %1140 = vmatpush1.bf16.msra.mxu0 %v319
  %1141 = vmatprep.subr.bf16.mxu0 %v324
  %1142 = vmatpush1.bf16.msra.mxu0 %v323
  %1143 = vmatprep.subr.bf16.mxu0 0
  %1144 = vmatpush1.bf16.msra.mxu0 0
  %1145 = vmatprep.subr.bf16.mxu0 0
  %1146 = vmatpush1.bf16.msra.mxu0 0
  %1147 = vmatprep.subr.bf16.mxu0 0
  %1148 = vmatpush1.bf16.msra.mxu0 0
  %1149 = vmatprep.subr.bf16.mxu0 0
  %1150 = vmatpush1.bf16.msra.mxu0 0
  %1151 = vmatprep.subr.bf16.mxu0 0
  %1152 = vmatpush1.bf16.msra.mxu0 0
  %1153 = vmatprep.subr.bf16.mxu0 0
  %1154 = vmatpush1.bf16.msra.mxu0 0
  %1155 = vmatprep.subr.bf16.mxu0 0
  %1156 = vmatpush1.bf16.msra.mxu0 0
  %1157 = vmatprep.subr.bf16.mxu0 0
  %1158 = vmatpush1.bf16.msra.mxu0 0
  %1159 = vmatprep.mubr.bf16.mxu0 0
  %1160 = vmatmul.mubr.bf16.gmra.mrb[0].mxu0 %v1039
  %v1161 = vpop.f32.mrb[0].mxu0
  %v1162 = vadd.f32 0.0, %v1161
  %v1163 = vpop.f32.mrb[0].mxu0
  %v1164 = vadd.f32 0.0, %v1163
  %v1165 = vpop.f32.mrb[0].mxu0
  %v1166 = vpop.f32.mrb[0].mxu0
  %1167 = vdwg.mxu0
  %1168 = vmatprep.subr.bf16.mxu0 %v298
  %1169 = vmatpush1.bf16.msra.mxu0 %v297
  %1170 = vmatprep.subr.bf16.mxu0 %v302
  %1171 = vmatpush1.bf16.msra.mxu0 %v301
  %1172 = vmatprep.subr.bf16.mxu0 %v306
  %1173 = vmatpush1.bf16.msra.mxu0 %v305
  %1174 = vmatprep.subr.bf16.mxu0 %v310
  %1175 = vmatpush1.bf16.msra.mxu0 %v309
  %1176 = vmatprep.subr.bf16.mxu0 %v314
  %1177 = vmatpush1.bf16.msra.mxu0 %v313
  %1178 = vmatprep.subr.bf16.mxu0 %v318
  %1179 = vmatpush1.bf16.msra.mxu0 %v317
  %1180 = vmatprep.subr.bf16.mxu0 %v322
  %1181 = vmatpush1.bf16.msra.mxu0 %v321
  %1182 = vmatprep.subr.bf16.mxu0 %v326
  %1183 = vmatpush1.bf16.msra.mxu0 %v325
  %1184 = vmatprep.subr.bf16.mxu0 0
  %1185 = vmatpush1.bf16.msra.mxu0 0
  %1186 = vmatprep.subr.bf16.mxu0 0
  %1187 = vmatpush1.bf16.msra.mxu0 0
  %1188 = vmatprep.subr.bf16.mxu0 0
  %1189 = vmatpush1.bf16.msra.mxu0 0
  %1190 = vmatprep.subr.bf16.mxu0 0
  %1191 = vmatpush1.bf16.msra.mxu0 0
  %1192 = vmatprep.subr.bf16.mxu0 0
  %1193 = vmatpush1.bf16.msra.mxu0 0
  %1194 = vmatprep.subr.bf16.mxu0 0
  %1195 = vmatpush1.bf16.msra.mxu0 0
  %1196 = vmatprep.subr.bf16.mxu0 0
  %1197 = vmatpush1.bf16.msra.mxu0 0
  %1198 = vmatprep.subr.bf16.mxu0 0
  %1199 = vmatpush1.bf16.msra.mxu0 0
  %1200 = vmatprep.mubr.bf16.mxu0 0
  %1201 = vmatmul.mubr.bf16.gmra.mrb[0].mxu0 %v1039
  %v1202 = vpop.f32.mrb[0].mxu0
  %v1203 = vadd.f32 0.0, %v1202
  %v1204 = vpop.f32.mrb[0].mxu0
  %v1205 = vadd.f32 0.0, %v1204
  %v1206 = vpop.f32.mrb[0].mxu0
  %v1207 = vpop.f32.mrb[0].mxu0
  %1208 = vdwg.mxu0
  %v1209 = vadd.f32 %v1080, %v1162
  %v1210 = vadd.f32 %v1082, %v1164
  %v1211 = vadd.f32 %v1121, %v1203
  %v1212 = vadd.f32 %v1123, %v1205
  %v1213 = vmul.f32 %v1209, 0.5
  %v1214 = vtanh.pop %v1213
  %v1215 = vadd.f32 %v1214, 1.0
  %v1216 = vmul.f32 %v1215, 0.5
  %v1217 = vmul.f32 %v1210, 0.5
  %v1218 = vtanh.pop %v1217
  %v1219 = vadd.f32 %v1218, 1.0
  %v1220 = vmul.f32 %v1219, 0.5
  %v1221 = vtanh.pop %v1211
  %v1222 = vmul.f32 %v1212, 0.5
  %v1223 = vtanh.pop %v1222
  %v1224 = vadd.f32 %v1223, 1.0
  %v1225 = vmul.f32 %v1224, 0.5
  %v1226 = vmul.f32 %v1220, %v1036
  %v1227 = vmul.f32 %v1216, %v1221
  %v1228 = vadd.f32 %v1226, %v1227
  %v1229 = vtanh.pop %v1228
  %v1230 = vmul.f32 %v1225, %v1229
  %v1231 = vpack.c.bf16 %v1230, %v1230
  %s1232 = scalar_lea.vmem %s0, 20
  %v1233 = vld [vmem:[%s1232] sm:$0xf]
  %v1235 = vsel %vm113, %v1233, 0
  %1237 = vmatprep.subr.bf16.mxu0 %v106
  %1238 = vmatpush1.bf16.msra.mxu0 %v105
  %1239 = vmatprep.subr.bf16.mxu0 0
  %1240 = vmatpush1.bf16.msra.mxu0 0
  %1241 = vmatprep.subr.bf16.mxu0 0
  %1242 = vmatpush1.bf16.msra.mxu0 0
  %1243 = vmatprep.subr.bf16.mxu0 0
  %1244 = vmatpush1.bf16.msra.mxu0 0
  %1245 = vmatprep.subr.bf16.mxu0 0
  %1246 = vmatpush1.bf16.msra.mxu0 0
  %1247 = vmatprep.subr.bf16.mxu0 0
  %1248 = vmatpush1.bf16.msra.mxu0 0
  %1249 = vmatprep.subr.bf16.mxu0 0
  %1250 = vmatpush1.bf16.msra.mxu0 0
  %1251 = vmatprep.subr.bf16.mxu0 0
  %1252 = vmatpush1.bf16.msra.mxu0 0
  %1253 = vmatprep.subr.bf16.mxu0 0
  %1254 = vmatpush1.bf16.msra.mxu0 0
  %1255 = vmatprep.subr.bf16.mxu0 0
  %1256 = vmatpush1.bf16.msra.mxu0 0
  %1257 = vmatprep.subr.bf16.mxu0 0
  %1258 = vmatpush1.bf16.msra.mxu0 0
  %1259 = vmatprep.subr.bf16.mxu0 0
  %1260 = vmatpush1.bf16.msra.mxu0 0
  %1261 = vmatprep.subr.bf16.mxu0 0
  %1262 = vmatpush1.bf16.msra.mxu0 0
  %1263 = vmatprep.subr.bf16.mxu0 0
  %1264 = vmatpush1.bf16.msra.mxu0 0
  %1265 = vmatprep.subr.bf16.mxu0 0
  %1266 = vmatpush1.bf16.msra.mxu0 0
  %1267 = vmatprep.subr.bf16.mxu0 0
  %1268 = vmatpush1.bf16.msra.mxu0 0
  %1269 = vmatprep.mubr.bf16.mxu0 0
  %1270 = vmatmul.mubr.bf16.gmra.mrb[0].mxu0 %v1235
  %v1271 = vpop.f32.mrb[0].mxu0
  %v1272 = vadd.f32 %v76, %v1271
  %v1273 = vpop.f32.mrb[0].mxu0
  %v1274 = vadd.f32 %v80, %v1273
  %v1275 = vpop.f32.mrb[0].mxu0
  %v1276 = vpop.f32.mrb[0].mxu0
  %1277 = vdwg.mxu0
  %1278 = vmatprep.subr.bf16.mxu0 %v108
  %1279 = vmatpush1.bf16.msra.mxu0 %v107
  %1280 = vmatprep.subr.bf16.mxu0 0
  %1281 = vmatpush1.bf16.msra.mxu0 0
  %1282 = vmatprep.subr.bf16.mxu0 0
  %1283 = vmatpush1.bf16.msra.mxu0 0
  %1284 = vmatprep.subr.bf16.mxu0 0
  %1285 = vmatpush1.bf16.msra.mxu0 0
  %1286 = vmatprep.subr.bf16.mxu0 0
  %1287 = vmatpush1.bf16.msra.mxu0 0
  %1288 = vmatprep.subr.bf16.mxu0 0
  %1289 = vmatpush1.bf16.msra.mxu0 0
  %1290 = vmatprep.subr.bf16.mxu0 0
  %1291 = vmatpush1.bf16.msra.mxu0 0
  %1292 = vmatprep.subr.bf16.mxu0 0
  %1293 = vmatpush1.bf16.msra.mxu0 0
  %1294 = vmatprep.subr.bf16.mxu0 0
  %1295 = vmatpush1.bf16.msra.mxu0 0
  %1296 = vmatprep.subr.bf16.mxu0 0
  %1297 = vmatpush1.bf16.msra.mxu0 0
  %1298 = vmatprep.subr.bf16.mxu0 0
  %1299 = vmatpush1.bf16.msra.mxu0 0
  %1300 = vmatprep.subr.bf16.mxu0 0
  %1301 = vmatpush1.bf16.msra.mxu0 0
  %1302 = vmatprep.subr.bf16.mxu0 0
  %1303 = vmatpush1.bf16.msra.mxu0 0
  %1304 = vmatprep.subr.bf16.mxu0 0
  %1305 = vmatpush1.bf16.msra.mxu0 0
  %1306 = vmatprep.subr.bf16.mxu0 0
  %1307 = vmatpush1.bf16.msra.mxu0 0
  %1308 = vmatprep.subr.bf16.mxu0 0
  %1309 = vmatpush1.bf16.msra.mxu0 0
  %1310 = vmatprep.mubr.bf16.mxu0 0
  %1311 = vmatmul.mubr.bf16.gmra.mrb[0].mxu0 %v1235
  %v1312 = vpop.f32.mrb[0].mxu0
  %v1313 = vadd.f32 %v84, %v1312
  %v1314 = vpop.f32.mrb[0].mxu0
  %v1315 = vadd.f32 %v88, %v1314
  %v1316 = vpop.f32.mrb[0].mxu0
  %v1317 = vpop.f32.mrb[0].mxu0
  %1318 = vdwg.mxu0
  %1319 = vmatprep.subr.bf16.mxu0 %v296
  %1320 = vmatpush1.bf16.msra.mxu0 %v295
  %1321 = vmatprep.subr.bf16.mxu0 %v300
  %1322 = vmatpush1.bf16.msra.mxu0 %v299
  %1323 = vmatprep.subr.bf16.mxu0 %v304
  %1324 = vmatpush1.bf16.msra.mxu0 %v303
  %1325 = vmatprep.subr.bf16.mxu0 %v308
  %1326 = vmatpush1.bf16.msra.mxu0 %v307
  %1327 = vmatprep.subr.bf16.mxu0 %v312
  %1328 = vmatpush1.bf16.msra.mxu0 %v311
  %1329 = vmatprep.subr.bf16.mxu0 %v316
  %1330 = vmatpush1.bf16.msra.mxu0 %v315
  %1331 = vmatprep.subr.bf16.mxu0 %v320
  %1332 = vmatpush1.bf16.msra.mxu0 %v319
  %1333 = vmatprep.subr.bf16.mxu0 %v324
  %1334 = vmatpush1.bf16.msra.mxu0 %v323
  %1335 = vmatprep.subr.bf16.mxu0 0
  %1336 = vmatpush1.bf16.msra.mxu0 0
  %1337 = vmatprep.subr.bf16.mxu0 0
  %1338 = vmatpush1.bf16.msra.mxu0 0
  %1339 = vmatprep.subr.bf16.mxu0 0
  %1340 = vmatpush1.bf16.msra.mxu0 0
  %1341 = vmatprep.subr.bf16.mxu0 0
  %1342 = vmatpush1.bf16.msra.mxu0 0
  %1343 = vmatprep.subr.bf16.mxu0 0
  %1344 = vmatpush1.bf16.msra.mxu0 0
  %1345 = vmatprep.subr.bf16.mxu0 0
  %1346 = vmatpush1.bf16.msra.mxu0 0
  %1347 = vmatprep.subr.bf16.mxu0 0
  %1348 = vmatpush1.bf16.msra.mxu0 0
  %1349 = vmatprep.subr.bf16.mxu0 0
  %1350 = vmatpush1.bf16.msra.mxu0 0
  %1351 = vmatprep.mubr.bf16.mxu0 0
  %1352 = vmatmul.mubr.bf16.gmra.mrb[0].mxu0 %v1231
  %v1353 = vpop.f32.mrb[0].mxu0
  %v1354 = vadd.f32 0.0, %v1353
  %v1355 = vpop.f32.mrb[0].mxu0
  %v1356 = vadd.f32 0.0, %v1355
  %v1357 = vpop.f32.mrb[0].mxu0
  %v1358 = vpop.f32.mrb[0].mxu0
  %1359 = vdwg.mxu0
  %1360 = vmatprep.subr.bf16.mxu0 %v298
  %1361 = vmatpush1.bf16.msra.mxu0 %v297
  %1362 = vmatprep.subr.bf16.mxu0 %v302
  %1363 = vmatpush1.bf16.msra.mxu0 %v301
  %1364 = vmatprep.subr.bf16.mxu0 %v306
  %1365 = vmatpush1.bf16.msra.mxu0 %v305
  %1366 = vmatprep.subr.bf16.mxu0 %v310
  %1367 = vmatpush1.bf16.msra.mxu0 %v309
  %1368 = vmatprep.subr.bf16.mxu0 %v314
  %1369 = vmatpush1.bf16.msra.mxu0 %v313
  %1370 = vmatprep.subr.bf16.mxu0 %v318
  %1371 = vmatpush1.bf16.msra.mxu0 %v317
  %1372 = vmatprep.subr.bf16.mxu0 %v322
  %1373 = vmatpush1.bf16.msra.mxu0 %v321
  %1374 = vmatprep.subr.bf16.mxu0 %v326
  %1375 = vmatpush1.bf16.msra.mxu0 %v325
  %1376 = vmatprep.subr.bf16.mxu0 0
  %1377 = vmatpush1.bf16.msra.mxu0 0
  %1378 = vmatprep.subr.bf16.mxu0 0
  %1379 = vmatpush1.bf16.msra.mxu0 0
  %1380 = vmatprep.subr.bf16.mxu0 0
  %1381 = vmatpush1.bf16.msra.mxu0 0
  %1382 = vmatprep.subr.bf16.mxu0 0
  %1383 = vmatpush1.bf16.msra.mxu0 0
  %1384 = vmatprep.subr.bf16.mxu0 0
  %1385 = vmatpush1.bf16.msra.mxu0 0
  %1386 = vmatprep.subr.bf16.mxu0 0
  %1387 = vmatpush1.bf16.msra.mxu0 0
  %1388 = vmatprep.subr.bf16.mxu0 0
  %1389 = vmatpush1.bf16.msra.mxu0 0
  %1390 = vmatprep.subr.bf16.mxu0 0
  %1391 = vmatpush1.bf16.msra.mxu0 0
  %1392 = vmatprep.mubr.bf16.mxu0 0
  %1393 = vmatmul.mubr.bf16.gmra.mrb[0].mxu0 %v1231
  %v1394 = vpop.f32.mrb[0].mxu0
  %v1395 = vadd.f32 0.0, %v1394
  %v1396 = vpop.f32.mrb[0].mxu0
  %v1397 = vadd.f32 0.0, %v1396
  %v1398 = vpop.f32.mrb[0].mxu0
  %v1399 = vpop.f32.mrb[0].mxu0
  %1400 = vdwg.mxu0
  %v1401 = vadd.f32 %v1272, %v1354
  %v1402 = vadd.f32 %v1274, %v1356
  %v1403 = vadd.f32 %v1313, %v1395
  %v1404 = vadd.f32 %v1315, %v1397
  %v1405 = vmul.f32 %v1401, 0.5
  %v1406 = vtanh.pop %v1405
  %v1407 = vadd.f32 %v1406, 1.0
  %v1408 = vmul.f32 %v1407, 0.5
  %v1409 = vmul.f32 %v1402, 0.5
  %v1410 = vtanh.pop %v1409
  %v1411 = vadd.f32 %v1410, 1.0
  %v1412 = vmul.f32 %v1411, 0.5
  %v1413 = vtanh.pop %v1403
  %v1414 = vmul.f32 %v1404, 0.5
  %v1415 = vtanh.pop %v1414
  %v1416 = vadd.f32 %v1415, 1.0
  %v1417 = vmul.f32 %v1416, 0.5
  %v1418 = vmul.f32 %v1412, %v1228
  %v1419 = vmul.f32 %v1408, %v1413
  %v1420 = vadd.f32 %v1418, %v1419
  %v1421 = vtanh.pop %v1420
  %v1422 = vmul.f32 %v1417, %v1421
  %v1423 = vpack.c.bf16 %v1422, %v1422
  %s1424 = scalar_lea.vmem %s0, 24
  %v1425 = vld [vmem:[%s1424] sm:$0xf]
  %v1427 = vsel %vm113, %v1425, 0
  %1429 = vmatprep.subr.bf16.mxu0 %v106
  %1430 = vmatpush1.bf16.msra.mxu0 %v105
  %1431 = vmatprep.subr.bf16.mxu0 0
  %1432 = vmatpush1.bf16.msra.mxu0 0
  %1433 = vmatprep.subr.bf16.mxu0 0
  %1434 = vmatpush1.bf16.msra.mxu0 0
  %1435 = vmatprep.subr.bf16.mxu0 0
  %1436 = vmatpush1.bf16.msra.mxu0 0
  %1437 = vmatprep.subr.bf16.mxu0 0
  %1438 = vmatpush1.bf16.msra.mxu0 0
  %1439 = vmatprep.subr.bf16.mxu0 0
  %1440 = vmatpush1.bf16.msra.mxu0 0
  %1441 = vmatprep.subr.bf16.mxu0 0
  %1442 = vmatpush1.bf16.msra.mxu0 0
  %1443 = vmatprep.subr.bf16.mxu0 0
  %1444 = vmatpush1.bf16.msra.mxu0 0
  %1445 = vmatprep.subr.bf16.mxu0 0
  %1446 = vmatpush1.bf16.msra.mxu0 0
  %1447 = vmatprep.subr.bf16.mxu0 0
  %1448 = vmatpush1.bf16.msra.mxu0 0
  %1449 = vmatprep.subr.bf16.mxu0 0
  %1450 = vmatpush1.bf16.msra.mxu0 0
  %1451 = vmatprep.subr.bf16.mxu0 0
  %1452 = vmatpush1.bf16.msra.mxu0 0
  %1453 = vmatprep.subr.bf16.mxu0 0
  %1454 = vmatpush1.bf16.msra.mxu0 0
  %1455 = vmatprep.subr.bf16.mxu0 0
  %1456 = vmatpush1.bf16.msra.mxu0 0
  %1457 = vmatprep.subr.bf16.mxu0 0
  %1458 = vmatpush1.bf16.msra.mxu0 0
  %1459 = vmatprep.subr.bf16.mxu0 0
  %1460 = vmatpush1.bf16.msra.mxu0 0
  %1461 = vmatprep.mubr.bf16.mxu0 0
  %1462 = vmatmul.mubr.bf16.gmra.mrb[0].mxu0 %v1427
  %v1463 = vpop.f32.mrb[0].mxu0
  %v1464 = vadd.f32 %v76, %v1463
  %v1465 = vpop.f32.mrb[0].mxu0
  %v1466 = vadd.f32 %v80, %v1465
  %v1467 = vpop.f32.mrb[0].mxu0
  %v1468 = vpop.f32.mrb[0].mxu0
  %1469 = vdwg.mxu0
  %1470 = vmatprep.subr.bf16.mxu0 %v108
  %1471 = vmatpush1.bf16.msra.mxu0 %v107
  %1472 = vmatprep.subr.bf16.mxu0 0
  %1473 = vmatpush1.bf16.msra.mxu0 0
  %1474 = vmatprep.subr.bf16.mxu0 0
  %1475 = vmatpush1.bf16.msra.mxu0 0
  %1476 = vmatprep.subr.bf16.mxu0 0
  %1477 = vmatpush1.bf16.msra.mxu0 0
  %1478 = vmatprep.subr.bf16.mxu0 0
  %1479 = vmatpush1.bf16.msra.mxu0 0
  %1480 = vmatprep.subr.bf16.mxu0 0
  %1481 = vmatpush1.bf16.msra.mxu0 0
  %1482 = vmatprep.subr.bf16.mxu0 0
  %1483 = vmatpush1.bf16.msra.mxu0 0
  %1484 = vmatprep.subr.bf16.mxu0 0
  %1485 = vmatpush1.bf16.msra.mxu0 0
  %1486 = vmatprep.subr.bf16.mxu0 0
  %1487 = vmatpush1.bf16.msra.mxu0 0
  %1488 = vmatprep.subr.bf16.mxu0 0
  %1489 = vmatpush1.bf16.msra.mxu0 0
  %1490 = vmatprep.subr.bf16.mxu0 0
  %1491 = vmatpush1.bf16.msra.mxu0 0
  %1492 = vmatprep.subr.bf16.mxu0 0
  %1493 = vmatpush1.bf16.msra.mxu0 0
  %1494 = vmatprep.subr.bf16.mxu0 0
  %1495 = vmatpush1.bf16.msra.mxu0 0
  %1496 = vmatprep.subr.bf16.mxu0 0
  %1497 = vmatpush1.bf16.msra.mxu0 0
  %1498 = vmatprep.subr.bf16.mxu0 0
  %1499 = vmatpush1.bf16.msra.mxu0 0
  %1500 = vmatprep.subr.bf16.mxu0 0
  %1501 = vmatpush1.bf16.msra.mxu0 0
  %1502 = vmatprep.mubr.bf16.mxu0 0
  %1503 = vmatmul.mubr.bf16.gmra.mrb[0].mxu0 %v1427
  %v1504 = vpop.f32.mrb[0].mxu0
  %v1505 = vadd.f32 %v84, %v1504
  %v1506 = vpop.f32.mrb[0].mxu0
  %v1507 = vadd.f32 %v88, %v1506
  %v1508 = vpop.f32.mrb[0].mxu0
  %v1509 = vpop.f32.mrb[0].mxu0
  %1510 = vdwg.mxu0
  %1511 = vmatprep.subr.bf16.mxu0 %v296
  %1512 = vmatpush1.bf16.msra.mxu0 %v295
  %1513 = vmatprep.subr.bf16.mxu0 %v300
  %1514 = vmatpush1.bf16.msra.mxu0 %v299
  %1515 = vmatprep.subr.bf16.mxu0 %v304
  %1516 = vmatpush1.bf16.msra.mxu0 %v303
  %1517 = vmatprep.subr.bf16.mxu0 %v308
  %1518 = vmatpush1.bf16.msra.mxu0 %v307
  %1519 = vmatprep.subr.bf16.mxu0 %v312
  %1520 = vmatpush1.bf16.msra.mxu0 %v311
  %1521 = vmatprep.subr.bf16.mxu0 %v316
  %1522 = vmatpush1.bf16.msra.mxu0 %v315
  %1523 = vmatprep.subr.bf16.mxu0 %v320
  %1524 = vmatpush1.bf16.msra.mxu0 %v319
  %1525 = vmatprep.subr.bf16.mxu0 %v324
  %1526 = vmatpush1.bf16.msra.mxu0 %v323
  %1527 = vmatprep.subr.bf16.mxu0 0
  %1528 = vmatpush1.bf16.msra.mxu0 0
  %1529 = vmatprep.subr.bf16.mxu0 0
  %1530 = vmatpush1.bf16.msra.mxu0 0
  %1531 = vmatprep.subr.bf16.mxu0 0
  %1532 = vmatpush1.bf16.msra.mxu0 0
  %1533 = vmatprep.subr.bf16.mxu0 0
  %1534 = vmatpush1.bf16.msra.mxu0 0
  %1535 = vmatprep.subr.bf16.mxu0 0
  %1536 = vmatpush1.bf16.msra.mxu0 0
  %1537 = vmatprep.subr.bf16.mxu0 0
  %1538 = vmatpush1.bf16.msra.mxu0 0
  %1539 = vmatprep.subr.bf16.mxu0 0
  %1540 = vmatpush1.bf16.msra.mxu0 0
  %1541 = vmatprep.subr.bf16.mxu0 0
  %1542 = vmatpush1.bf16.msra.mxu0 0
  %1543 = vmatprep.mubr.bf16.mxu0 0
  %1544 = vmatmul.mubr.bf16.gmra.mrb[0].mxu0 %v1423
  %v1545 = vpop.f32.mrb[0].mxu0
  %v1546 = vadd.f32 0.0, %v1545
  %v1547 = vpop.f32.mrb[0].mxu0
  %v1548 = vadd.f32 0.0, %v1547
  %v1549 = vpop.f32.mrb[0].mxu0
  %v1550 = vpop.f32.mrb[0].mxu0
  %1551 = vdwg.mxu0
  %1552 = vmatprep.subr.bf16.mxu0 %v298
  %1553 = vmatpush1.bf16.msra.mxu0 %v297
  %1554 = vmatprep.subr.bf16.mxu0 %v302
  %1555 = vmatpush1.bf16.msra.mxu0 %v301
  %1556 = vmatprep.subr.bf16.mxu0 %v306
  %1557 = vmatpush1.bf16.msra.mxu0 %v305
  %1558 = vmatprep.subr.bf16.mxu0 %v310
  %1559 = vmatpush1.bf16.msra.mxu0 %v309
  %1560 = vmatprep.subr.bf16.mxu0 %v314
  %1561 = vmatpush1.bf16.msra.mxu0 %v313
  %1562 = vmatprep.subr.bf16.mxu0 %v318
  %1563 = vmatpush1.bf16.msra.mxu0 %v317
  %1564 = vmatprep.subr.bf16.mxu0 %v322
  %1565 = vmatpush1.bf16.msra.mxu0 %v321
  %1566 = vmatprep.subr.bf16.mxu0 %v326
  %1567 = vmatpush1.bf16.msra.mxu0 %v325
  %1568 = vmatprep.subr.bf16.mxu0 0
  %1569 = vmatpush1.bf16.msra.mxu0 0
  %1570 = vmatprep.subr.bf16.mxu0 0
  %1571 = vmatpush1.bf16.msra.mxu0 0
  %1572 = vmatprep.subr.bf16.mxu0 0
  %1573 = vmatpush1.bf16.msra.mxu0 0
  %1574 = vmatprep.subr.bf16.mxu0 0
  %1575 = vmatpush1.bf16.msra.mxu0 0
  %1576 = vmatprep.subr.bf16.mxu0 0
  %1577 = vmatpush1.bf16.msra.mxu0 0
  %1578 = vmatprep.subr.bf16.mxu0 0
  %1579 = vmatpush1.bf16.msra.mxu0 0
  %1580 = vmatprep.subr.bf16.mxu0 0
  %1581 = vmatpush1.bf16.msra.mxu0 0
  %1582 = vmatprep.subr.bf16.mxu0 0
  %1583 = vmatpush1.bf16.msra.mxu0 0
  %1584 = vmatprep.mubr.bf16.mxu0 0
  %1585 = vmatmul.mubr.bf16.gmra.mrb[0].mxu0 %v1423
  %v1586 = vpop.f32.mrb[0].mxu0
  %v1587 = vadd.f32 0.0, %v1586
  %v1588 = vpop.f32.mrb[0].mxu0
  %v1589 = vadd.f32 0.0, %v1588
  %v1590 = vpop.f32.mrb[0].mxu0
  %v1591 = vpop.f32.mrb[0].mxu0
  %1592 = vdwg.mxu0
  %v1593 = vadd.f32 %v1464, %v1546
  %v1594 = vadd.f32 %v1466, %v1548
  %v1595 = vadd.f32 %v1505, %v1587
  %v1596 = vadd.f32 %v1507, %v1589
  %v1597 = vmul.f32 %v1593, 0.5
  %v1598 = vtanh.pop %v1597
  %v1599 = vadd.f32 %v1598, 1.0
  %v1600 = vmul.f32 %v1599, 0.5
  %v1601 = vmul.f32 %v1594, 0.5
  %v1602 = vtanh.pop %v1601
  %v1603 = vadd.f32 %v1602, 1.0
  %v1604 = vmul.f32 %v1603, 0.5
  %v1605 = vtanh.pop %v1595
  %v1606 = vmul.f32 %v1596, 0.5
  %v1607 = vtanh.pop %v1606
  %v1608 = vadd.f32 %v1607, 1.0
  %v1609 = vmul.f32 %v1608, 0.5
  %v1610 = vmul.f32 %v1604, %v1420
  %v1611 = vmul.f32 %v1600, %v1605
  %v1612 = vadd.f32 %v1610, %v1611
  %v1613 = vtanh.pop %v1612
  %v1614 = vmul.f32 %v1609, %v1613
  %v1615 = vpack.c.bf16 %v1614, %v1614
  %s1616 = scalar_lea.vmem %s0, 28
  %v1617 = vld [vmem:[%s1616] sm:$0xf]
  %v1619 = vsel %vm113, %v1617, 0
  %1621 = vmatprep.subr.bf16.mxu0 %v106
  %1622 = vmatpush1.bf16.msra.mxu0 %v105
  %1623 = vmatprep.subr.bf16.mxu0 0
  %1624 = vmatpush1.bf16.msra.mxu0 0
  %1625 = vmatprep.subr.bf16.mxu0 0
  %1626 = vmatpush1.bf16.msra.mxu0 0
  %1627 = vmatprep.subr.bf16.mxu0 0
  %1628 = vmatpush1.bf16.msra.mxu0 0
  %1629 = vmatprep.subr.bf16.mxu0 0
  %1630 = vmatpush1.bf16.msra.mxu0 0
  %1631 = vmatprep.subr.bf16.mxu0 0
  %1632 = vmatpush1.bf16.msra.mxu0 0
  %1633 = vmatprep.subr.bf16.mxu0 0
  %1634 = vmatpush1.bf16.msra.mxu0 0
  %1635 = vmatprep.subr.bf16.mxu0 0
  %1636 = vmatpush1.bf16.msra.mxu0 0
  %1637 = vmatprep.subr.bf16.mxu0 0
  %1638 = vmatpush1.bf16.msra.mxu0 0
  %1639 = vmatprep.subr.bf16.mxu0 0
  %1640 = vmatpush1.bf16.msra.mxu0 0
  %1641 = vmatprep.subr.bf16.mxu0 0
  %1642 = vmatpush1.bf16.msra.mxu0 0
  %1643 = vmatprep.subr.bf16.mxu0 0
  %1644 = vmatpush1.bf16.msra.mxu0 0
  %1645 = vmatprep.subr.bf16.mxu0 0
  %1646 = vmatpush1.bf16.msra.mxu0 0
  %1647 = vmatprep.subr.bf16.mxu0 0
  %1648 = vmatpush1.bf16.msra.mxu0 0
  %1649 = vmatprep.subr.bf16.mxu0 0
  %1650 = vmatpush1.bf16.msra.mxu0 0
  %1651 = vmatprep.subr.bf16.mxu0 0
  %1652 = vmatpush1.bf16.msra.mxu0 0
  %1653 = vmatprep.mubr.bf16.mxu0 0
  %1654 = vmatmul.mubr.bf16.gmra.mrb[0].mxu0 %v1619
  %v1655 = vpop.f32.mrb[0].mxu0
  %v1656 = vadd.f32 %v76, %v1655
  %v1657 = vpop.f32.mrb[0].mxu0
  %v1658 = vadd.f32 %v80, %v1657
  %v1659 = vpop.f32.mrb[0].mxu0
  %v1660 = vpop.f32.mrb[0].mxu0
  %1661 = vdwg.mxu0
  %1662 = vmatprep.subr.bf16.mxu0 %v108
  %1663 = vmatpush1.bf16.msra.mxu0 %v107
  %1664 = vmatprep.subr.bf16.mxu0 0
  %1665 = vmatpush1.bf16.msra.mxu0 0
  %1666 = vmatprep.subr.bf16.mxu0 0
  %1667 = vmatpush1.bf16.msra.mxu0 0
  %1668 = vmatprep.subr.bf16.mxu0 0
  %1669 = vmatpush1.bf16.msra.mxu0 0
  %1670 = vmatprep.subr.bf16.mxu0 0
  %1671 = vmatpush1.bf16.msra.mxu0 0
  %1672 = vmatprep.subr.bf16.mxu0 0
  %1673 = vmatpush1.bf16.msra.mxu0 0
  %1674 = vmatprep.subr.bf16.mxu0 0
  %1675 = vmatpush1.bf16.msra.mxu0 0
  %1676 = vmatprep.subr.bf16.mxu0 0
  %1677 = vmatpush1.bf16.msra.mxu0 0
  %1678 = vmatprep.subr.bf16.mxu0 0
  %1679 = vmatpush1.bf16.msra.mxu0 0
  %1680 = vmatprep.subr.bf16.mxu0 0
  %1681 = vmatpush1.bf16.msra.mxu0 0
  %1682 = vmatprep.subr.bf16.mxu0 0
  %1683 = vmatpush1.bf16.msra.mxu0 0
  %1684 = vmatprep.subr.bf16.mxu0 0
  %1685 = vmatpush1.bf16.msra.mxu0 0
  %1686 = vmatprep.subr.bf16.mxu0 0
  %1687 = vmatpush1.bf16.msra.mxu0 0
  %1688 = vmatprep.subr.bf16.mxu0 0
  %1689 = vmatpush1.bf16.msra.mxu0 0
  %1690 = vmatprep.subr.bf16.mxu0 0
  %1691 = vmatpush1.bf16.msra.mxu0 0
  %1692 = vmatprep.subr.bf16.mxu0 0
  %1693 = vmatpush1.bf16.msra.mxu0 0
  %1694 = vmatprep.mubr.bf16.mxu0 0
  %1695 = vmatmul.mubr.bf16.gmra.mrb[0].mxu0 %v1619
  %v1696 = vpop.f32.mrb[0].mxu0
  %v1697 = vadd.f32 %v84, %v1696
  %v1698 = vpop.f32.mrb[0].mxu0
  %v1699 = vadd.f32 %v88, %v1698
  %v1700 = vpop.f32.mrb[0].mxu0
  %v1701 = vpop.f32.mrb[0].mxu0
  %1702 = vdwg.mxu0
  %1703 = vmatprep.subr.bf16.mxu0 %v296
  %1704 = vmatpush1.bf16.msra.mxu0 %v295
  %1705 = vmatprep.subr.bf16.mxu0 %v300
  %1706 = vmatpush1.bf16.msra.mxu0 %v299
  %1707 = vmatprep.subr.bf16.mxu0 %v304
  %1708 = vmatpush1.bf16.msra.mxu0 %v303
  %1709 = vmatprep.subr.bf16.mxu0 %v308
  %1710 = vmatpush1.bf16.msra.mxu0 %v307
  %1711 = vmatprep.subr.bf16.mxu0 %v312
  %1712 = vmatpush1.bf16.msra.mxu0 %v311
  %1713 = vmatprep.subr.bf16.mxu0 %v316
  %1714 = vmatpush1.bf16.msra.mxu0 %v315
  %1715 = vmatprep.subr.bf16.mxu0 %v320
  %1716 = vmatpush1.bf16.msra.mxu0 %v319
  %1717 = vmatprep.subr.bf16.mxu0 %v324
  %1718 = vmatpush1.bf16.msra.mxu0 %v323
  %1719 = vmatprep.subr.bf16.mxu0 0
  %1720 = vmatpush1.bf16.msra.mxu0 0
  %1721 = vmatprep.subr.bf16.mxu0 0
  %1722 = vmatpush1.bf16.msra.mxu0 0
  %1723 = vmatprep.subr.bf16.mxu0 0
  %1724 = vmatpush1.bf16.msra.mxu0 0
  %1725 = vmatprep.subr.bf16.mxu0 0
  %1726 = vmatpush1.bf16.msra.mxu0 0
  %1727 = vmatprep.subr.bf16.mxu0 0
  %1728 = vmatpush1.bf16.msra.mxu0 0
  %1729 = vmatprep.subr.bf16.mxu0 0
  %1730 = vmatpush1.bf16.msra.mxu0 0
  %1731 = vmatprep.subr.bf16.mxu0 0
  %1732 = vmatpush1.bf16.msra.mxu0 0
  %1733 = vmatprep.subr.bf16.mxu0 0
  %1734 = vmatpush1.bf16.msra.mxu0 0
  %1735 = vmatprep.mubr.bf16.mxu0 0
  %1736 = vmatmul.mubr.bf16.gmra.mrb[0].mxu0 %v1615
  %v1737 = vpop.f32.mrb[0].mxu0
  %v1738 = vadd.f32 0.0, %v1737
  %v1739 = vpop.f32.mrb[0].mxu0
  %v1740 = vadd.f32 0.0, %v1739
  %v1741 = vpop.f32.mrb[0].mxu0
  %v1742 = vpop.f32.mrb[0].mxu0
  %1743 = vdwg.mxu0
  %1744 = vmatprep.subr.bf16.mxu0 %v298
  %1745 = vmatpush1.bf16.msra.mxu0 %v297
  %1746 = vmatprep.subr.bf16.mxu0 %v302
  %1747 = vmatpush1.bf16.msra.mxu0 %v301
  %1748 = vmatprep.subr.bf16.mxu0 %v306
  %1749 = vmatpush1.bf16.msra.mxu0 %v305
  %1750 = vmatprep.subr.bf16.mxu0 %v310
  %1751 = vmatpush1.bf16.msra.mxu0 %v309
  %1752 = vmatprep.subr.bf16.mxu0 %v314
  %1753 = vmatpush1.bf16.msra.mxu0 %v313
  %1754 = vmatprep.subr.bf16.mxu0 %v318
  %1755 = vmatpush1.bf16.msra.mxu0 %v317
  %1756 = vmatprep.subr.bf16.mxu0 %v322
  %1757 = vmatpush1.bf16.msra.mxu0 %v321
  %1758 = vmatprep.subr.bf16.mxu0 %v326
  %1759 = vmatpush1.bf16.msra.mxu0 %v325
  %1760 = vmatprep.subr.bf16.mxu0 0
  %1761 = vmatpush1.bf16.msra.mxu0 0
  %1762 = vmatprep.subr.bf16.mxu0 0
  %1763 = vmatpush1.bf16.msra.mxu0 0
  %1764 = vmatprep.subr.bf16.mxu0 0
  %1765 = vmatpush1.bf16.msra.mxu0 0
  %1766 = vmatprep.subr.bf16.mxu0 0
  %1767 = vmatpush1.bf16.msra.mxu0 0
  %1768 = vmatprep.subr.bf16.mxu0 0
  %1769 = vmatpush1.bf16.msra.mxu0 0
  %1770 = vmatprep.subr.bf16.mxu0 0
  %1771 = vmatpush1.bf16.msra.mxu0 0
  %1772 = vmatprep.subr.bf16.mxu0 0
  %1773 = vmatpush1.bf16.msra.mxu0 0
  %1774 = vmatprep.subr.bf16.mxu0 0
  %1775 = vmatpush1.bf16.msra.mxu0 0
  %1776 = vmatprep.mubr.bf16.mxu0 0
  %1777 = vmatmul.mubr.bf16.gmra.mrb[0].mxu0 %v1615
  %v1778 = vpop.f32.mrb[0].mxu0
  %v1779 = vadd.f32 0.0, %v1778
  %v1780 = vpop.f32.mrb[0].mxu0
  %v1781 = vadd.f32 0.0, %v1780
  %v1782 = vpop.f32.mrb[0].mxu0
  %v1783 = vpop.f32.mrb[0].mxu0
  %1784 = vdwg.mxu0
  %v1785 = vadd.f32 %v1656, %v1738
  %v1786 = vadd.f32 %v1658, %v1740
  %v1787 = vadd.f32 %v1697, %v1779
  %v1788 = vadd.f32 %v1699, %v1781
  %v1789 = vmul.f32 %v1785, 0.5
  %v1790 = vtanh.pop %v1789
  %v1791 = vadd.f32 %v1790, 1.0
  %v1792 = vmul.f32 %v1791, 0.5
  %v1793 = vmul.f32 %v1786, 0.5
  %v1794 = vtanh.pop %v1793
  %v1795 = vadd.f32 %v1794, 1.0
  %v1796 = vmul.f32 %v1795, 0.5
  %v1797 = vtanh.pop %v1787
  %v1798 = vmul.f32 %v1788, 0.5
  %v1799 = vtanh.pop %v1798
  %v1800 = vadd.f32 %v1799, 1.0
  %v1801 = vmul.f32 %v1800, 0.5
  %v1802 = vmul.f32 %v1796, %v1612
  %v1803 = vmul.f32 %v1792, %v1797
  %v1804 = vadd.f32 %v1802, %v1803
  %v1805 = vtanh.pop %v1804
  %v1806 = vmul.f32 %v1801, %v1805
  %v1807 = vpack.c.bf16 %v1806, %v1806
  %1808 = vst [vmem:[#allocation2] sm:$0xf] %v1807
  %1809 = vst [vmem:[#allocation3] sm:$0xff] %v1804
  // Predicated region
  $region30: #{lstm_forward.1} parent=0 // pred_check
    %p1810 = pneg %p26
  $region31: #{lstm_forward.1} parent=0 // pred_check_branch
    %1812 = sbr.rel (%p1810) target = $region33
  $region32: #{lstm_forward.1} parent=0 // pred_region
    %v1813 = vunpack.c.l.bf16 %v1807
    %v1814 = vld [vmem:[%s4] sm:$0x1]
    %v1816 = vlaneseq
    %v1817 = vshrl.u32 %v1816, 7
    %v1818 = vsub.s32 0, %v1817
    %v1819 = vrot.slane %v1814, %v1818
    %v1821 = vmul.f32 %v1813, %v1819
    %1822 = vadd.xlane.f32.xlu0 %v1821
    %v1823 = vpop.xlane.xlu0 %1822
    %v1824 = vld [vmem:[#allocation4] sm:$0x1]
    %v1826 = vlaneseq
    %v1827 = vshrl.u32 %v1826, 7
    %v1828 = vsub.s32 0, %v1827
    %v1829 = vrot.slane %v1824, %v1828
    %v1831 = vadd.f32 %v1823, %v1829
    %vm1832 = vcmask 7168
    %1833 = vst.msk [vmem:[%s6] sm:$0xff] %vm1832, %v1831
  $region33: #{lstm_forward.1} parent=0 // pred_fallthru
    _
  // Predicated region
  $region34: #{lstm_forward.1} parent=0 // pred_check
    _
  $region35: #{lstm_forward.1} parent=0 // pred_check_branch
    %1835 = sbr.rel (0) target = $region37
  $region36: #{lstm_forward.1} parent=0 // pred_region
    _
  $region37: #{lstm_forward.1} parent=0 // pred_fallthru
    _
  // Predicated region
  $region38: #{lstm_forward.1} parent=0 // pred_check
    _
  $region39: #{lstm_forward.1} parent=0 // pred_check_branch
    %1837 = sbr.rel (0) target = $region41
  $region40: #{lstm_forward.1} parent=0 // pred_region
    _
  $region41: #{lstm_forward.1} parent=0 // pred_fallthru
    _

</llo_original>
